<compile_context>
chip_gen: v6e
topology: v6e:2x2x1
jax: 0.10.0
libtpu: 0.0.40
codegen_flags: <defaults>
</compile_context>

<pallas_src>
import math
import functools

import jax
import jax.numpy as jnp
from jax.experimental import pallas as pl
from jax.experimental.pallas import tpu as pltpu

EPS = 1e-10  # matches LayerNormalization(epsilon=1e-10)


# ----------------------------- fused kernel ---------------------------------
def fused_encoder_kernel(
    x_ref,                       # (B, K, M)   input sequence block (f32)
    wqkv_ref, bqkv_ref,          # (1, M, 3M) bf16, (1, 1, 3M) f32
    wo_ref, bo_ref,              # (1, M, M)  bf16, (1, 1, M)  f32
    ln1_s_ref, ln1_b_ref,        # (1, 1, M),  (1, 1, M)  f32
    w1_ref, b1_ref,              # (1, M, F)  bf16, (1, 1, F)  f32
    w2_ref, b2_ref,              # (1, F, M)  bf16, (1, 1, M)  f32
    ln2_s_ref, ln2_b_ref,        # (1, 1, M),  (1, 1, M)  f32
    o_ref,                       # (B, K, M)   VMEM-resident activation / output (f32)
    ctx_ref,                     # (B*K, M)    bf16 scratch: concatenated head contexts
    *, num_heads,
):
    layer = pl.program_id(1)

    # Layer 0: seed the VMEM-resident activation. o_ref is revisited across the
    # layer axis so it only goes back to HBM once per batch block. (A one-time
    # store+reload here is cheaper than re-reading x_ref every layer.)
    @pl.when(layer == 0)
    def _():
        o_ref[...] = x_ref[...]

    B, K, M = o_ref.shape
    H = num_heads
    Dh = M // H
    R = B * K
    # scaled_dot_product divides by sqrt(dim of the projected query) == sqrt(Dh)
    inv_sqrt_d = 1.0 / math.sqrt(Dh)

    x2 = o_ref[...].astype(jnp.float32).reshape(R, M)   # collapse batch/seq rows

    # ---- Fused QKV projection: one bf16 MXU matmul, f32 accumulation ----
    qkv = jnp.dot(x2.astype(jnp.bfloat16), wqkv_ref[0],
                  preferred_element_type=jnp.float32) + bqkv_ref[0]
    # columns [0,M) = Q, [M,2M) = K, [2M,3M) = V (head-major within each).

    # ---- Attention: per-head, writing each head's context straight into the
    # ctx scratch at a static column slice (no concat / no long live ranges).
    # NOTE: per-head lane slices are 128-aligned only when Dh % 128 == 0; at
    # smaller head dims (incl. this test) the extracts go through masked lanes.
    for h in range(H):
        q_h = qkv[:, h * Dh:(h + 1) * Dh].reshape(B, K, Dh).astype(jnp.bfloat16)
        k_h = qkv[:, M + h * Dh:M + (h + 1) * Dh].reshape(B, K, Dh).astype(jnp.bfloat16)
        v_h = qkv[:, 2 * M + h * Dh:2 * M + (h + 1) * Dh].reshape(B, K, Dh).astype(jnp.bfloat16)
        s = jnp.einsum('bqd,bkd->bqk', q_h, k_h,
                       preferred_element_type=jnp.float32) * inv_sqrt_d
        s = s - jnp.max(s, axis=-1, keepdims=True)
        p = jnp.exp(s)
        # approx EUP reciprocal only for the softmax denominator
        p = p * pl.reciprocal(jnp.sum(p, axis=-1, keepdims=True), approx=True)
        head = jnp.einsum('bqk,bkd->bqd', p.astype(jnp.bfloat16), v_h,
                          preferred_element_type=jnp.float32)
        ctx_ref[:, h * Dh:(h + 1) * Dh] = head.reshape(R, Dh).astype(jnp.bfloat16)

    # ---- Single output projection of the concatenated heads ----
    mha = jnp.dot(ctx_ref[...], wo_ref[0],
                  preferred_element_type=jnp.float32) + bo_ref[0]

    # ---- Residual + LayerNorm 1 (exact): scale*(z-mean)/(std+eps) + shift ----
    z1 = x2 + mha
    mu1 = jnp.mean(z1, axis=-1, keepdims=True)
    d1 = z1 - mu1
    std1 = jnp.sqrt(jnp.mean(d1 * d1, axis=-1, keepdims=True))
    x1 = ln1_s_ref[0] * d1 / (std1 + EPS) + ln1_b_ref[0]
    # TODO(synk): dropout omitted (identity / eval mode).

    # ---- FeedForward: linear - relu - linear (bf16 MXU inputs, f32 acc) ----
    h1 = jnp.dot(x1.astype(jnp.bfloat16), w1_ref[0],
                 preferred_element_type=jnp.float32) + b1_ref[0]
    h1 = jnp.maximum(h1, 0.0)
    ffn = jnp.dot(h1.astype(jnp.bfloat16), w2_ref[0],
                  preferred_element_type=jnp.float32) + b2_ref[0]

    # ---- Residual + LayerNorm 2 (exact) ----
    z2 = x1 + ffn
    mu2 = jnp.mean(z2, axis=-1, keepdims=True)
    d2 = z2 - mu2
    std2 = jnp.sqrt(jnp.mean(d2 * d2, axis=-1, keepdims=True))
    y = ln2_s_ref[0] * d2 / (std2 + EPS) + ln2_b_ref[0]

    o_ref[...] = y.reshape(B, K, M).astype(o_ref.dtype)


# ------------------------------- wrapper -------------------------------------
def _pick_batch_block(n, k, target_rows=512):
    """Largest divisor of n such that (a) the batch grid has >= 2 blocks when
    n >= 2 (both v7x TensorCores get work) and (b) Bb*K <= target_rows."""
    divisors = [d for d in range(1, n + 1) if n % d == 0]
    cands = [d for d in divisors if n // d >= 2] or divisors
    fitting = [d for d in cands if d * k <= target_rows]
    return max(fitting) if fitting else min(cands)


def _vmem_limit_bytes(Bb, K, M, F):
    """Shape-derived VMEM budget: double-buffered bf16 weights + f32 vectors,
    double-buffered activation in/out blocks, intermediates, 1.5x margin."""
    r = Bb * K
    wbytes = 2 * 2 * (3 * M * M + M * M + M * F + F * M)       # bf16 matmul weights x2 buffers
    vbytes = 2 * 4 * (3 * M + M + 2 * M + F + M + 2 * M)       # f32 biases + LN params x2 buffers
    iobytes = 2 * 4 * r * M * 2                                # input + output blocks x2 buffers
    inter = 4 * r * (3 * M + F + 3 * M) + 2 * r * M            # qkv, h1, residual/LN temps + bf16 ctx
    est = int((wbytes + vbytes + iobytes + inter) * 1.5) + (8 << 20)
    try:
        cap = int(pltpu.get_tpu_info().vmem_capacity_bytes * 3 // 4)
    except Exception:
        cap = 64 << 20                                         # safe on every generation
    return max(32 << 20, min(est, cap))


def encoder_forward(src_seq, stacked_params, num_heads, *, target_rows=512):
    """Full Encoder.forward (all layers) in ONE pallas_call.

    src_seq: (N, K, M) float32.
    stacked_params: tuple of per-layer-stacked arrays (leading dim = num_layers);
      matmul weights are bf16, biases / LN params are f32.
    """
    N, K, M = src_seq.shape
    L = stacked_params[0].shape[0]
    F = stacked_params[6].shape[-1]          # w1 is (L, M, F)
    Bb = _pick_batch_block(N, K, target_rows)
    grid = (N // Bb, L)                      # batch blocks (parallel) x layers (arbitrary)

    def x_map(b, l):
        return (b, 0, 0)                     # same block across layer axis -> VMEM resident

    def w_map(b, l):
        return (l, 0, 0)                     # stream this layer's weights (double-buffered)

    in_specs = [pl.BlockSpec((Bb, K, M), x_map)]
    in_specs += [pl.BlockSpec((1,) + p.shape[1:], w_map) for p in stacked_params]

    kernel = functools.partial(fused_encoder_kernel, num_heads=num_heads)

    return pl.pallas_call(
        kernel,
        out_shape=jax.ShapeDtypeStruct((N, K, M), src_seq.dtype),
        grid=grid,
        in_specs=in_specs,
        out_specs=pl.BlockSpec((Bb, K, M), x_map),
        scratch_shapes=[pltpu.VMEM((Bb * K, M), jnp.bfloat16)],
        input_output_aliases={0: 0},         # reuse src_seq's HBM buffer for the output
        compiler_params=pltpu.CompilerParams(
            dimension_semantics=("parallel", "arbitrary"),
            vmem_limit_bytes=_vmem_limit_bytes(Bb, K, M, F),
        ),
    )(src_seq, *stacked_params)


# ----------------------- deterministic parameter init -----------------------
def _xavier_uniform(key, shape, fan_in, fan_out):
    limit = math.sqrt(6.0 / (fan_in + fan_out))
    return jax.random.uniform(key, shape, jnp.float32, -limit, limit)


def _bias_uniform(key, shape, fan_in):
    bound = 1.0 / math.sqrt(fan_in)
    return jax.random.uniform(key, shape, jnp.float32, -bound, bound)


def init_encoder_params(key, num_layers, num_heads, emb_dim, feedforward_dim):
    """Weights stored pre-transposed (in_dim, out_dim), QKV fused, layer-stacked.
    Matmul weights are bf16 (MXU inputs / halved HBM+VMEM); biases+LN are f32."""
    H, M, F = num_heads, emb_dim, feedforward_dim
    Dh = M // H

    def one_layer(k):
        ks = jax.random.split(k, 12)
        # per-head Linear(M, Dh) weights (xavier) concatenated head-major -> (M, M)
        wq = _xavier_uniform(ks[0], (M, M), M, Dh)
        wk = _xavier_uniform(ks[1], (M, M), M, Dh)
        wv = _xavier_uniform(ks[2], (M, M), M, Dh)
        wqkv = jnp.concatenate([wq, wk, wv], axis=1).astype(jnp.bfloat16)   # (M, 3M)
        bq = _bias_uniform(ks[3], (1, M), M)
        bk = _bias_uniform(ks[4], (1, M), M)
        bv = _bias_uniform(ks[5], (1, M), M)
        bqkv = jnp.concatenate([bq, bk, bv], axis=1)                        # (1, 3M) f32
        wo = _xavier_uniform(ks[6], (M, M), M, M).astype(jnp.bfloat16)      # Linear(M,M)^T
        bo = _bias_uniform(ks[7], (1, M), M)
        ln1_s = jnp.ones((1, M), jnp.float32)
        ln1_b = jnp.zeros((1, M), jnp.float32)
        w1 = _xavier_uniform(ks[8], (M, F), M, F).astype(jnp.bfloat16)
        b1 = _bias_uniform(ks[9], (1, F), M)
        w2 = _xavier_uniform(ks[10], (F, M), F, M).astype(jnp.bfloat16)
        b2 = _bias_uniform(ks[11], (1, M), F)
        ln2_s = jnp.ones((1, M), jnp.float32)
        ln2_b = jnp.zeros((1, M), jnp.float32)
        return (wqkv, bqkv, wo, bo, ln1_s, ln1_b,
                w1, b1, w2, b2, ln2_s, ln2_b)

    layer_keys = jax.random.split(key, num_layers)
    per_layer = [one_layer(k) for k in layer_keys]
    n_params = len(per_layer[0])
    return tuple(jnp.stack([per_layer[l][i] for l in range(num_layers)], axis=0)
                 for i in range(n_params))


# --------------------------- pure-JAX reference ------------------------------
def encoder_reference(x, stacked_params, num_heads):
    """Matches the Encoder forward pass with the same precision policy as the
    kernel (bf16 matmul inputs, f32 accumulation, exact LayerNorms)."""
    (wqkv, bqkv, wo, bo, ln1_s, ln1_b, w1, b1, w2, b2, ln2_s, ln2_b) = stacked_params
    L = wqkv.shape[0]
    N, K, M = x.shape
    H = num_heads
    Dh = M // H
    bf = jnp.bfloat16
    f32 = jnp.float32
    y = x.astype(f32)
    for l in range(L):
        y2 = y.reshape(N * K, M)
        qkv = jnp.dot(y2.astype(bf), wqkv[l], preferred_element_type=f32) + bqkv[l]
        heads = []
        for h in range(H):
            q = qkv[:, h * Dh:(h + 1) * Dh].reshape(N, K, Dh).astype(bf)
            k = qkv[:, M + h * Dh:M + (h + 1) * Dh].reshape(N, K, Dh).astype(bf)
            v = qkv[:, 2 * M + h * Dh:2 * M + (h + 1) * Dh].reshape(N, K, Dh).astype(bf)
            s = jnp.einsum('bqd,bkd->bqk', q, k, preferred_element_type=f32) / math.sqrt(Dh)
            p = jax.nn.softmax(s, axis=-1)
            heads.append(jnp.einsum('bqk,bkd->bqd', p.astype(bf), v,
                                    preferred_element_type=f32))
        ctx = jnp.concatenate(heads, axis=-1).reshape(N * K, M).astype(bf)
        mha = jnp.dot(ctx, wo[l], preferred_element_type=f32) + bo[l]
        z1 = y2 + mha
        mu = jnp.mean(z1, -1, keepdims=True)
        std = jnp.sqrt(jnp.mean((z1 - mu) ** 2, -1, keepdims=True))
        x1 = ln1_s[l] * (z1 - mu) / (std + EPS) + ln1_b[l]
        h1 = jnp.maximum(jnp.dot(x1.astype(bf), w1[l], preferred_element_type=f32) + b1[l], 0.0)
        ffn = jnp.dot(h1.astype(bf), w2[l], preferred_element_type=f32) + b2[l]
        z2 = x1 + ffn
        mu2 = jnp.mean(z2, -1, keepdims=True)
        std2 = jnp.sqrt(jnp.mean((z2 - mu2) ** 2, -1, keepdims=True))
        y = (ln2_s[l] * (z2 - mu2) / (std2 + EPS) + ln2_b[l]).reshape(N, K, M)
    return y


if __name__ == "__main__":
    # Small shapes consistent with the module's (N, K, M) convention.
    N, K, M = 2, 8, 32           # batch, seq_len, emb_dim
    num_heads = 4
    feedforward_dim = 64
    num_layers = 2
    # dropout treated as identity (eval mode)

    root = jax.random.PRNGKey(0)
    k_x, k_p = jax.random.split(root)
    src_seq = jax.random.normal(k_x, (N, K, M), jnp.float32)
    params = init_encoder_params(k_p, num_layers, num_heads, M, feedforward_dim)

    # Reference first: src_seq's buffer may be reused by the aliased kernel output.
    ref = jax.block_until_ready(encoder_reference(src_seq, params, num_heads))

    out = encoder_forward(src_seq, params, num_heads)
    out = jax.block_until_ready(out)
    assert out.shape == (N, K, M) and out.dtype == jnp.float32

    # Kernel and reference share the same bf16/f32 precision policy; the only
    # kernel-side approximation left is the EUP softmax reciprocal (~1e-4 rel).
    max_err = float(jnp.max(jnp.abs(out - ref)))
    assert max_err < 2e-2, max_err

    print("KERNEL_OK")
</pallas_src>

<mosaic_0001>
module attributes {stable_mosaic.version = 11 : i64} {
  func.func @fused_encoder_kernel(%arg0: i32, %arg1: i32, %arg2: memref<1x8x32xf32, #tpu.memory_space<vmem>>, %arg3: memref<1x32x96xbf16, #tpu.memory_space<vmem>>, %arg4: memref<1x1x96xf32, #tpu.memory_space<vmem>>, %arg5: memref<1x32x32xbf16, #tpu.memory_space<vmem>>, %arg6: memref<1x1x32xf32, #tpu.memory_space<vmem>>, %arg7: memref<1x1x32xf32, #tpu.memory_space<vmem>>, %arg8: memref<1x1x32xf32, #tpu.memory_space<vmem>>, %arg9: memref<1x32x64xbf16, #tpu.memory_space<vmem>>, %arg10: memref<1x1x64xf32, #tpu.memory_space<vmem>>, %arg11: memref<1x64x32xbf16, #tpu.memory_space<vmem>>, %arg12: memref<1x1x32xf32, #tpu.memory_space<vmem>>, %arg13: memref<1x1x32xf32, #tpu.memory_space<vmem>>, %arg14: memref<1x1x32xf32, #tpu.memory_space<vmem>>, %arg15: memref<1x8x32xf32, #tpu.memory_space<vmem>>, %arg16: memref<8x32xbf16, #tpu.memory_space<vmem>>) attributes {dimension_semantics = [#tpu.dimension_semantics<parallel>, #tpu.dimension_semantics<arbitrary>], iteration_bounds = array<i64: 2, 2>, scalar_prefetch = 0 : i64, scratch_operands = 1 : i64, tpu.core_type = #tpu.core_type<tc>, window_params = [{transform_indices = @transform_0, window_bounds = array<i64: 1, 8, 32>}, {transform_indices = @transform_1, window_bounds = array<i64: 1, 32, 96>}, {transform_indices = @transform_2, window_bounds = array<i64: 1, 1, 96>}, {transform_indices = @transform_3, window_bounds = array<i64: 1, 32, 32>}, {transform_indices = @transform_4, window_bounds = array<i64: 1, 1, 32>}, {transform_indices = @transform_5, window_bounds = array<i64: 1, 1, 32>}, {transform_indices = @transform_6, window_bounds = array<i64: 1, 1, 32>}, {transform_indices = @transform_7, window_bounds = array<i64: 1, 32, 64>}, {transform_indices = @transform_8, window_bounds = array<i64: 1, 1, 64>}, {transform_indices = @transform_9, window_bounds = array<i64: 1, 64, 32>}, {transform_indices = @transform_10, window_bounds = array<i64: 1, 1, 32>}, {transform_indices = @transform_11, window_bounds = array<i64: 1, 1, 32>}, {transform_indices = @transform_12, window_bounds = array<i64: 1, 1, 32>}, {transform_indices = @transform_13, window_bounds = array<i64: 1, 8, 32>}]} {
    %c0_i32 = arith.constant 0 : i32
    %0 = arith.cmpi eq, %arg1, %c0_i32 : i32
    %1 = arith.extui %0 : i1 to i32
    %c0_i32_0 = arith.constant 0 : i32
    %2 = arith.cmpi ne, %1, %c0_i32_0 : i32
    scf.if %2 {
      %c0_83 = arith.constant 0 : index
      %c0_84 = arith.constant 0 : index
      %c0_85 = arith.constant 0 : index
      %199 = vector.load %arg2[%c0_83, %c0_84, %c0_85] : memref<1x8x32xf32, #tpu.memory_space<vmem>>, vector<1x8x32xf32>
      %c0_86 = arith.constant 0 : index
      %c0_87 = arith.constant 0 : index
      %c0_88 = arith.constant 0 : index
      %200 = vector.load %arg15[%c0_86, %c0_87, %c0_88] : memref<1x8x32xf32, #tpu.memory_space<vmem>>, vector<1x8x32xf32>
      tpu.vector_store %arg15[%c0_86, %c0_87, %c0_88], %199 {strides = array<i32>} : memref<1x8x32xf32, #tpu.memory_space<vmem>>, vector<1x8x32xf32>,
    } else {
    }
    %c0 = arith.constant 0 : index
    %c0_1 = arith.constant 0 : index
    %c0_2 = arith.constant 0 : index
    %3 = vector.load %arg15[%c0, %c0_1, %c0_2] : memref<1x8x32xf32, #tpu.memory_space<vmem>>, vector<1x8x32xf32>
    %4 = vector.shape_cast %3 : vector<1x8x32xf32> to vector<8x32xf32>
    %5 = arith.truncf %4 : vector<8x32xf32> to vector<8x32xbf16>
    %c0_3 = arith.constant 0 : index
    %c0_4 = arith.constant 0 : index
    %c0_5 = arith.constant 0 : index
    %6 = vector.load %arg3[%c0_3, %c0_4, %c0_5] : memref<1x32x96xbf16, #tpu.memory_space<vmem>>, vector<1x32x96xbf16>
    %7 = vector.shape_cast %6 : vector<1x32x96xbf16> to vector<32x96xbf16>
    %cst = arith.constant dense<0.000000e+00> : vector<8x96xf32>
    %8 = tpu.matmul %5, %7, %cst {dimension_numbers = #tpu.dot_dimension_numbers<[1], [0], [0], [1], [0, 0, 1, 1], [], []>} : vector<8x32xbf16>, vector<32x96xbf16>, vector<8x96xf32> -> vector<8x96xf32>
    %c0_6 = arith.constant 0 : index
    %c0_7 = arith.constant 0 : index
    %c0_8 = arith.constant 0 : index
    %9 = vector.load %arg4[%c0_6, %c0_7, %c0_8] : memref<1x1x96xf32, #tpu.memory_space<vmem>>, vector<1x1x96xf32>
    %10 = vector.shape_cast %9 : vector<1x1x96xf32> to vector<1x96xf32>
    %11 = vector.broadcast %10 : vector<1x96xf32> to vector<8x96xf32>
    %12 = arith.addf %8, %11 : vector<8x96xf32>
    %13 = vector.extract_strided_slice %12 {offsets = [0, 0], sizes = [8, 8], strides = [1, 1]} : vector<8x96xf32> to vector<8x8xf32>
    %14 = vector.shape_cast %13 : vector<8x8xf32> to vector<1x8x8xf32>
    %15 = arith.truncf %14 : vector<1x8x8xf32> to vector<1x8x8xbf16>
    %16 = vector.extract_strided_slice %12 {offsets = [0, 32], sizes = [8, 8], strides = [1, 1]} : vector<8x96xf32> to vector<8x8xf32>
    %17 = vector.shape_cast %16 : vector<8x8xf32> to vector<1x8x8xf32>
    %18 = arith.truncf %17 : vector<1x8x8xf32> to vector<1x8x8xbf16>
    %19 = vector.extract_strided_slice %12 {offsets = [0, 64], sizes = [8, 8], strides = [1, 1]} : vector<8x96xf32> to vector<8x8xf32>
    %20 = vector.shape_cast %19 : vector<8x8xf32> to vector<1x8x8xf32>
    %21 = arith.truncf %20 : vector<1x8x8xf32> to vector<1x8x8xbf16>
    "tpu.trace_start"() <{level = 10 : i32, message = "bqd,bkd->bqk"}> : () -> ()
    %cst_9 = arith.constant dense<0.000000e+00> : vector<1x8x8xf32>
    %22 = tpu.matmul %15, %18, %cst_9 {dimension_numbers = #tpu.dot_dimension_numbers<[2], [2], [1], [1], [0, 0, 0, 1, 1, 1], [0], [0]>} : vector<1x8x8xbf16>, vector<1x8x8xbf16>, vector<1x8x8xf32> -> vector<1x8x8xf32>
    "tpu.trace_stop"() : () -> ()
    %cst_10 = arith.constant 0.353553385 : f32
    %23 = vector.broadcast %cst_10 : f32 to vector<1x8x8xf32>
    %24 = arith.mulf %22, %23 : vector<1x8x8xf32>
    %cst_11 = arith.constant dense<0xFF800000> : vector<1x8xf32>
    %25 = vector.multi_reduction <maximumf>, %24, %cst_11 [2] : vector<1x8x8xf32> to vector<1x8xf32>
    %26 = vector.shape_cast %25 : vector<1x8xf32> to vector<1x8x1xf32>
    %27 = vector.broadcast %26 : vector<1x8x1xf32> to vector<1x8x8xf32>
    %28 = arith.subf %24, %27 : vector<1x8x8xf32>
    %29 = math.exp %28 : vector<1x8x8xf32>
    %cst_12 = arith.constant dense<0.000000e+00> : vector<1x8xf32>
    %30 = vector.multi_reduction <add>, %29, %cst_12 [2] : vector<1x8x8xf32> to vector<1x8xf32>
    %31 = vector.shape_cast %30 : vector<1x8xf32> to vector<1x8x1xf32>
    %32 = tpu.reciprocal %31 {approx = true} : vector<1x8x1xf32> -> vector<1x8x1xf32>
    %33 = vector.broadcast %32 : vector<1x8x1xf32> to vector<1x8x8xf32>
    %34 = arith.mulf %29, %33 : vector<1x8x8xf32>
    %35 = arith.truncf %34 : vector<1x8x8xf32> to vector<1x8x8xbf16>
    "tpu.trace_start"() <{level = 10 : i32, message = "bqk,bkd->bqd"}> : () -> ()
    %cst_13 = arith.constant dense<0.000000e+00> : vector<1x8x8xf32>
    %36 = tpu.matmul %35, %21, %cst_13 {dimension_numbers = #tpu.dot_dimension_numbers<[2], [1], [1], [2], [0, 0, 0, 1, 1, 2], [0], [0]>} : vector<1x8x8xbf16>, vector<1x8x8xbf16>, vector<1x8x8xf32> -> vector<1x8x8xf32>
    "tpu.trace_stop"() : () -> ()
    %37 = vector.shape_cast %36 : vector<1x8x8xf32> to vector<8x8xf32>
    %38 = arith.truncf %37 : vector<8x8xf32> to vector<8x8xbf16>
    %c0_14 = arith.constant 0 : index
    %c0_15 = arith.constant 0 : index
    %39 = vector.load %arg16[%c0_14, %c0_15] : memref<8x32xbf16, #tpu.memory_space<vmem>>, vector<8x8xbf16>
    tpu.vector_store %arg16[%c0_14, %c0_15], %38 {strides = array<i32>} : memref<8x32xbf16, #tpu.memory_space<vmem>>, vector<8x8xbf16>,
    %40 = vector.extract_strided_slice %12 {offsets = [0, 8], sizes = [8, 8], strides = [1, 1]} : vector<8x96xf32> to vector<8x8xf32>
    %41 = vector.shape_cast %40 : vector<8x8xf32> to vector<1x8x8xf32>
    %42 = arith.truncf %41 : vector<1x8x8xf32> to vector<1x8x8xbf16>
    %43 = vector.extract_strided_slice %12 {offsets = [0, 40], sizes = [8, 8], strides = [1, 1]} : vector<8x96xf32> to vector<8x8xf32>
    %44 = vector.shape_cast %43 : vector<8x8xf32> to vector<1x8x8xf32>
    %45 = arith.truncf %44 : vector<1x8x8xf32> to vector<1x8x8xbf16>
    %46 = vector.extract_strided_slice %12 {offsets = [0, 72], sizes = [8, 8], strides = [1, 1]} : vector<8x96xf32> to vector<8x8xf32>
    %47 = vector.shape_cast %46 : vector<8x8xf32> to vector<1x8x8xf32>
    %48 = arith.truncf %47 : vector<1x8x8xf32> to vector<1x8x8xbf16>
    "tpu.trace_start"() <{level = 10 : i32, message = "bqd,bkd->bqk"}> : () -> ()
    %cst_16 = arith.constant dense<0.000000e+00> : vector<1x8x8xf32>
    %49 = tpu.matmul %42, %45, %cst_16 {dimension_numbers = #tpu.dot_dimension_numbers<[2], [2], [1], [1], [0, 0, 0, 1, 1, 1], [0], [0]>} : vector<1x8x8xbf16>, vector<1x8x8xbf16>, vector<1x8x8xf32> -> vector<1x8x8xf32>
    "tpu.trace_stop"() : () -> ()
    %cst_17 = arith.constant 0.353553385 : f32
    %50 = vector.broadcast %cst_17 : f32 to vector<1x8x8xf32>
    %51 = arith.mulf %49, %50 : vector<1x8x8xf32>
    %cst_18 = arith.constant dense<0xFF800000> : vector<1x8xf32>
    %52 = vector.multi_reduction <maximumf>, %51, %cst_18 [2] : vector<1x8x8xf32> to vector<1x8xf32>
    %53 = vector.shape_cast %52 : vector<1x8xf32> to vector<1x8x1xf32>
    %54 = vector.broadcast %53 : vector<1x8x1xf32> to vector<1x8x8xf32>
    %55 = arith.subf %51, %54 : vector<1x8x8xf32>
    %56 = math.exp %55 : vector<1x8x8xf32>
    %cst_19 = arith.constant dense<0.000000e+00> : vector<1x8xf32>
    %57 = vector.multi_reduction <add>, %56, %cst_19 [2] : vector<1x8x8xf32> to vector<1x8xf32>
    %58 = vector.shape_cast %57 : vector<1x8xf32> to vector<1x8x1xf32>
    %59 = tpu.reciprocal %58 {approx = true} : vector<1x8x1xf32> -> vector<1x8x1xf32>
    %60 = vector.broadcast %59 : vector<1x8x1xf32> to vector<1x8x8xf32>
    %61 = arith.mulf %56, %60 : vector<1x8x8xf32>
    %62 = arith.truncf %61 : vector<1x8x8xf32> to vector<1x8x8xbf16>
    "tpu.trace_start"() <{level = 10 : i32, message = "bqk,bkd->bqd"}> : () -> ()
    %cst_20 = arith.constant dense<0.000000e+00> : vector<1x8x8xf32>
    %63 = tpu.matmul %62, %48, %cst_20 {dimension_numbers = #tpu.dot_dimension_numbers<[2], [1], [1], [2], [0, 0, 0, 1, 1, 2], [0], [0]>} : vector<1x8x8xbf16>, vector<1x8x8xbf16>, vector<1x8x8xf32> -> vector<1x8x8xf32>
    "tpu.trace_stop"() : () -> ()
    %64 = vector.shape_cast %63 : vector<1x8x8xf32> to vector<8x8xf32>
    %65 = arith.truncf %64 : vector<8x8xf32> to vector<8x8xbf16>
    %c0_21 = arith.constant 0 : index
    %c8 = arith.constant 8 : index
    %66 = vector.load %arg16[%c0_21, %c8] : memref<8x32xbf16, #tpu.memory_space<vmem>>, vector<8x8xbf16>
    tpu.vector_store %arg16[%c0_21, %c8], %65 {strides = array<i32>} : memref<8x32xbf16, #tpu.memory_space<vmem>>, vector<8x8xbf16>,
    %67 = vector.extract_strided_slice %12 {offsets = [0, 16], sizes = [8, 8], strides = [1, 1]} : vector<8x96xf32> to vector<8x8xf32>
    %68 = vector.shape_cast %67 : vector<8x8xf32> to vector<1x8x8xf32>
    %69 = arith.truncf %68 : vector<1x8x8xf32> to vector<1x8x8xbf16>
    %70 = vector.extract_strided_slice %12 {offsets = [0, 48], sizes = [8, 8], strides = [1, 1]} : vector<8x96xf32> to vector<8x8xf32>
    %71 = vector.shape_cast %70 : vector<8x8xf32> to vector<1x8x8xf32>
    %72 = arith.truncf %71 : vector<1x8x8xf32> to vector<1x8x8xbf16>
    %73 = vector.extract_strided_slice %12 {offsets = [0, 80], sizes = [8, 8], strides = [1, 1]} : vector<8x96xf32> to vector<8x8xf32>
    %74 = vector.shape_cast %73 : vector<8x8xf32> to vector<1x8x8xf32>
    %75 = arith.truncf %74 : vector<1x8x8xf32> to vector<1x8x8xbf16>
    "tpu.trace_start"() <{level = 10 : i32, message = "bqd,bkd->bqk"}> : () -> ()
    %cst_22 = arith.constant dense<0.000000e+00> : vector<1x8x8xf32>
    %76 = tpu.matmul %69, %72, %cst_22 {dimension_numbers = #tpu.dot_dimension_numbers<[2], [2], [1], [1], [0, 0, 0, 1, 1, 1], [0], [0]>} : vector<1x8x8xbf16>, vector<1x8x8xbf16>, vector<1x8x8xf32> -> vector<1x8x8xf32>
    "tpu.trace_stop"() : () -> ()
    %cst_23 = arith.constant 0.353553385 : f32
    %77 = vector.broadcast %cst_23 : f32 to vector<1x8x8xf32>
    %78 = arith.mulf %76, %77 : vector<1x8x8xf32>
    %cst_24 = arith.constant dense<0xFF800000> : vector<1x8xf32>
    %79 = vector.multi_reduction <maximumf>, %78, %cst_24 [2] : vector<1x8x8xf32> to vector<1x8xf32>
    %80 = vector.shape_cast %79 : vector<1x8xf32> to vector<1x8x1xf32>
    %81 = vector.broadcast %80 : vector<1x8x1xf32> to vector<1x8x8xf32>
    %82 = arith.subf %78, %81 : vector<1x8x8xf32>
    %83 = math.exp %82 : vector<1x8x8xf32>
    %cst_25 = arith.constant dense<0.000000e+00> : vector<1x8xf32>
    %84 = vector.multi_reduction <add>, %83, %cst_25 [2] : vector<1x8x8xf32> to vector<1x8xf32>
    %85 = vector.shape_cast %84 : vector<1x8xf32> to vector<1x8x1xf32>
    %86 = tpu.reciprocal %85 {approx = true} : vector<1x8x1xf32> -> vector<1x8x1xf32>
    %87 = vector.broadcast %86 : vector<1x8x1xf32> to vector<1x8x8xf32>
    %88 = arith.mulf %83, %87 : vector<1x8x8xf32>
    %89 = arith.truncf %88 : vector<1x8x8xf32> to vector<1x8x8xbf16>
    "tpu.trace_start"() <{level = 10 : i32, message = "bqk,bkd->bqd"}> : () -> ()
    %cst_26 = arith.constant dense<0.000000e+00> : vector<1x8x8xf32>
    %90 = tpu.matmul %89, %75, %cst_26 {dimension_numbers = #tpu.dot_dimension_numbers<[2], [1], [1], [2], [0, 0, 0, 1, 1, 2], [0], [0]>} : vector<1x8x8xbf16>, vector<1x8x8xbf16>, vector<1x8x8xf32> -> vector<1x8x8xf32>
    "tpu.trace_stop"() : () -> ()
    %91 = vector.shape_cast %90 : vector<1x8x8xf32> to vector<8x8xf32>
    %92 = arith.truncf %91 : vector<8x8xf32> to vector<8x8xbf16>
    %c0_27 = arith.constant 0 : index
    %c16 = arith.constant 16 : index
    %93 = vector.load %arg16[%c0_27, %c16] : memref<8x32xbf16, #tpu.memory_space<vmem>>, vector<8x8xbf16>
    tpu.vector_store %arg16[%c0_27, %c16], %92 {strides = array<i32>} : memref<8x32xbf16, #tpu.memory_space<vmem>>, vector<8x8xbf16>,
    %94 = vector.extract_strided_slice %12 {offsets = [0, 24], sizes = [8, 8], strides = [1, 1]} : vector<8x96xf32> to vector<8x8xf32>
    %95 = vector.shape_cast %94 : vector<8x8xf32> to vector<1x8x8xf32>
    %96 = arith.truncf %95 : vector<1x8x8xf32> to vector<1x8x8xbf16>
    %97 = vector.extract_strided_slice %12 {offsets = [0, 56], sizes = [8, 8], strides = [1, 1]} : vector<8x96xf32> to vector<8x8xf32>
    %98 = vector.shape_cast %97 : vector<8x8xf32> to vector<1x8x8xf32>
    %99 = arith.truncf %98 : vector<1x8x8xf32> to vector<1x8x8xbf16>
    %100 = vector.extract_strided_slice %12 {offsets = [0, 88], sizes = [8, 8], strides = [1, 1]} : vector<8x96xf32> to vector<8x8xf32>
    %101 = vector.shape_cast %100 : vector<8x8xf32> to vector<1x8x8xf32>
    %102 = arith.truncf %101 : vector<1x8x8xf32> to vector<1x8x8xbf16>
    "tpu.trace_start"() <{level = 10 : i32, message = "bqd,bkd->bqk"}> : () -> ()
    %cst_28 = arith.constant dense<0.000000e+00> : vector<1x8x8xf32>
    %103 = tpu.matmul %96, %99, %cst_28 {dimension_numbers = #tpu.dot_dimension_numbers<[2], [2], [1], [1], [0, 0, 0, 1, 1, 1], [0], [0]>} : vector<1x8x8xbf16>, vector<1x8x8xbf16>, vector<1x8x8xf32> -> vector<1x8x8xf32>
    "tpu.trace_stop"() : () -> ()
    %cst_29 = arith.constant 0.353553385 : f32
    %104 = vector.broadcast %cst_29 : f32 to vector<1x8x8xf32>
    %105 = arith.mulf %103, %104 : vector<1x8x8xf32>
    %cst_30 = arith.constant dense<0xFF800000> : vector<1x8xf32>
    %106 = vector.multi_reduction <maximumf>, %105, %cst_30 [2] : vector<1x8x8xf32> to vector<1x8xf32>
    %107 = vector.shape_cast %106 : vector<1x8xf32> to vector<1x8x1xf32>
    %108 = vector.broadcast %107 : vector<1x8x1xf32> to vector<1x8x8xf32>
    %109 = arith.subf %105, %108 : vector<1x8x8xf32>
    %110 = math.exp %109 : vector<1x8x8xf32>
    %cst_31 = arith.constant dense<0.000000e+00> : vector<1x8xf32>
    %111 = vector.multi_reduction <add>, %110, %cst_31 [2] : vector<1x8x8xf32> to vector<1x8xf32>
    %112 = vector.shape_cast %111 : vector<1x8xf32> to vector<1x8x1xf32>
    %113 = tpu.reciprocal %112 {approx = true} : vector<1x8x1xf32> -> vector<1x8x1xf32>
    %114 = vector.broadcast %113 : vector<1x8x1xf32> to vector<1x8x8xf32>
    %115 = arith.mulf %110, %114 : vector<1x8x8xf32>
    %116 = arith.truncf %115 : vector<1x8x8xf32> to vector<1x8x8xbf16>
    "tpu.trace_start"() <{level = 10 : i32, message = "bqk,bkd->bqd"}> : () -> ()
    %cst_32 = arith.constant dense<0.000000e+00> : vector<1x8x8xf32>
    %117 = tpu.matmul %116, %102, %cst_32 {dimension_numbers = #tpu.dot_dimension_numbers<[2], [1], [1], [2], [0, 0, 0, 1, 1, 2], [0], [0]>} : vector<1x8x8xbf16>, vector<1x8x8xbf16>, vector<1x8x8xf32> -> vector<1x8x8xf32>
    "tpu.trace_stop"() : () -> ()
    %118 = vector.shape_cast %117 : vector<1x8x8xf32> to vector<8x8xf32>
    %119 = arith.truncf %118 : vector<8x8xf32> to vector<8x8xbf16>
    %c0_33 = arith.constant 0 : index
    %c24 = arith.constant 24 : index
    %120 = vector.load %arg16[%c0_33, %c24] : memref<8x32xbf16, #tpu.memory_space<vmem>>, vector<8x8xbf16>
    tpu.vector_store %arg16[%c0_33, %c24], %119 {strides = array<i32>} : memref<8x32xbf16, #tpu.memory_space<vmem>>, vector<8x8xbf16>,
    %c0_34 = arith.constant 0 : index
    %c0_35 = arith.constant 0 : index
    %121 = vector.load %arg16[%c0_34, %c0_35] : memref<8x32xbf16, #tpu.memory_space<vmem>>, vector<8x32xbf16>
    %c0_36 = arith.constant 0 : index
    %c0_37 = arith.constant 0 : index
    %c0_38 = arith.constant 0 : index
    %122 = vector.load %arg5[%c0_36, %c0_37, %c0_38] : memref<1x32x32xbf16, #tpu.memory_space<vmem>>, vector<1x32x32xbf16>
    %123 = vector.shape_cast %122 : vector<1x32x32xbf16> to vector<32x32xbf16>
    %cst_39 = arith.constant dense<0.000000e+00> : vector<8x32xf32>
    %124 = tpu.matmul %121, %123, %cst_39 {dimension_numbers = #tpu.dot_dimension_numbers<[1], [0], [0], [1], [0, 0, 1, 1], [], []>} : vector<8x32xbf16>, vector<32x32xbf16>, vector<8x32xf32> -> vector<8x32xf32>
    %c0_40 = arith.constant 0 : index
    %c0_41 = arith.constant 0 : index
    %c0_42 = arith.constant 0 : index
    %125 = vector.load %arg6[%c0_40, %c0_41, %c0_42] : memref<1x1x32xf32, #tpu.memory_space<vmem>>, vector<1x1x32xf32>
    %126 = vector.shape_cast %125 : vector<1x1x32xf32> to vector<1x32xf32>
    %127 = vector.broadcast %126 : vector<1x32xf32> to vector<8x32xf32>
    %128 = arith.addf %124, %127 : vector<8x32xf32>
    %129 = arith.addf %4, %128 : vector<8x32xf32>
    %cst_43 = arith.constant dense<0.000000e+00> : vector<8xf32>
    %130 = vector.multi_reduction <add>, %129, %cst_43 [1] : vector<8x32xf32> to vector<8xf32>
    %131 = vector.shape_cast %130 : vector<8xf32> to vector<8x1xf32>
    %cst_44 = arith.constant 3.200000e+01 : f32
    %132 = vector.broadcast %cst_44 : f32 to vector<8x1xf32>
    %133 = arith.divf %131, %132 : vector<8x1xf32>
    %134 = vector.broadcast %133 : vector<8x1xf32> to vector<8x32xf32>
    %135 = arith.subf %129, %134 : vector<8x32xf32>
    %136 = arith.mulf %135, %135 : vector<8x32xf32>
    %cst_45 = arith.constant dense<0.000000e+00> : vector<8xf32>
    %137 = vector.multi_reduction <add>, %136, %cst_45 [1] : vector<8x32xf32> to vector<8xf32>
    %138 = vector.shape_cast %137 : vector<8xf32> to vector<8x1xf32>
    %cst_46 = arith.constant 3.200000e+01 : f32
    %139 = vector.broadcast %cst_46 : f32 to vector<8x1xf32>
    %140 = arith.divf %138, %139 : vector<8x1xf32>
    %141 = math.sqrt %140 : vector<8x1xf32>
    %c0_47 = arith.constant 0 : index
    %c0_48 = arith.constant 0 : index
    %c0_49 = arith.constant 0 : index
    %142 = vector.load %arg7[%c0_47, %c0_48, %c0_49] : memref<1x1x32xf32, #tpu.memory_space<vmem>>, vector<1x1x32xf32>
    %143 = vector.shape_cast %142 : vector<1x1x32xf32> to vector<1x32xf32>
    %144 = vector.broadcast %143 : vector<1x32xf32> to vector<8x32xf32>
    %145 = arith.mulf %144, %135 : vector<8x32xf32>
    %cst_50 = arith.constant 1.000000e-10 : f32
    %146 = vector.broadcast %cst_50 : f32 to vector<8x1xf32>
    %147 = arith.addf %141, %146 : vector<8x1xf32>
    %148 = vector.broadcast %147 : vector<8x1xf32> to vector<8x32xf32>
    %149 = arith.divf %145, %148 : vector<8x32xf32>
    %c0_51 = arith.constant 0 : index
    %c0_52 = arith.constant 0 : index
    %c0_53 = arith.constant 0 : index
    %150 = vector.load %arg8[%c0_51, %c0_52, %c0_53] : memref<1x1x32xf32, #tpu.memory_space<vmem>>, vector<1x1x32xf32>
    %151 = vector.shape_cast %150 : vector<1x1x32xf32> to vector<1x32xf32>
    %152 = vector.broadcast %151 : vector<1x32xf32> to vector<8x32xf32>
    %153 = arith.addf %149, %152 : vector<8x32xf32>
    %154 = arith.truncf %153 : vector<8x32xf32> to vector<8x32xbf16>
    %c0_54 = arith.constant 0 : index
    %c0_55 = arith.constant 0 : index
    %c0_56 = arith.constant 0 : index
    %155 = vector.load %arg9[%c0_54, %c0_55, %c0_56] : memref<1x32x64xbf16, #tpu.memory_space<vmem>>, vector<1x32x64xbf16>
    %156 = vector.shape_cast %155 : vector<1x32x64xbf16> to vector<32x64xbf16>
    %cst_57 = arith.constant dense<0.000000e+00> : vector<8x64xf32>
    %157 = tpu.matmul %154, %156, %cst_57 {dimension_numbers = #tpu.dot_dimension_numbers<[1], [0], [0], [1], [0, 0, 1, 1], [], []>} : vector<8x32xbf16>, vector<32x64xbf16>, vector<8x64xf32> -> vector<8x64xf32>
    %c0_58 = arith.constant 0 : index
    %c0_59 = arith.constant 0 : index
    %c0_60 = arith.constant 0 : index
    %158 = vector.load %arg10[%c0_58, %c0_59, %c0_60] : memref<1x1x64xf32, #tpu.memory_space<vmem>>, vector<1x1x64xf32>
    %159 = vector.shape_cast %158 : vector<1x1x64xf32> to vector<1x64xf32>
    %160 = vector.broadcast %159 : vector<1x64xf32> to vector<8x64xf32>
    %161 = arith.addf %157, %160 : vector<8x64xf32>
    %cst_61 = arith.constant 0.000000e+00 : f32
    %162 = vector.broadcast %cst_61 : f32 to vector<8x64xf32>
    %163 = arith.maximumf %161, %162 : vector<8x64xf32>
    %164 = arith.truncf %163 : vector<8x64xf32> to vector<8x64xbf16>
    %c0_62 = arith.constant 0 : index
    %c0_63 = arith.constant 0 : index
    %c0_64 = arith.constant 0 : index
    %165 = vector.load %arg11[%c0_62, %c0_63, %c0_64] : memref<1x64x32xbf16, #tpu.memory_space<vmem>>, vector<1x64x32xbf16>
    %166 = vector.shape_cast %165 : vector<1x64x32xbf16> to vector<64x32xbf16>
    %cst_65 = arith.constant dense<0.000000e+00> : vector<8x32xf32>
    %167 = tpu.matmul %164, %166, %cst_65 {dimension_numbers = #tpu.dot_dimension_numbers<[1], [0], [0], [1], [0, 0, 1, 1], [], []>} : vector<8x64xbf16>, vector<64x32xbf16>, vector<8x32xf32> -> vector<8x32xf32>
    %c0_66 = arith.constant 0 : index
    %c0_67 = arith.constant 0 : index
    %c0_68 = arith.constant 0 : index
    %168 = vector.load %arg12[%c0_66, %c0_67, %c0_68] : memref<1x1x32xf32, #tpu.memory_space<vmem>>, vector<1x1x32xf32>
    %169 = vector.shape_cast %168 : vector<1x1x32xf32> to vector<1x32xf32>
    %170 = vector.broadcast %169 : vector<1x32xf32> to vector<8x32xf32>
    %171 = arith.addf %167, %170 : vector<8x32xf32>
    %172 = arith.addf %153, %171 : vector<8x32xf32>
    %cst_69 = arith.constant dense<0.000000e+00> : vector<8xf32>
    %173 = vector.multi_reduction <add>, %172, %cst_69 [1] : vector<8x32xf32> to vector<8xf32>
    %174 = vector.shape_cast %173 : vector<8xf32> to vector<8x1xf32>
    %cst_70 = arith.constant 3.200000e+01 : f32
    %175 = vector.broadcast %cst_70 : f32 to vector<8x1xf32>
    %176 = arith.divf %174, %175 : vector<8x1xf32>
    %177 = vector.broadcast %176 : vector<8x1xf32> to vector<8x32xf32>
    %178 = arith.subf %172, %177 : vector<8x32xf32>
    %179 = arith.mulf %178, %178 : vector<8x32xf32>
    %cst_71 = arith.constant dense<0.000000e+00> : vector<8xf32>
    %180 = vector.multi_reduction <add>, %179, %cst_71 [1] : vector<8x32xf32> to vector<8xf32>
    %181 = vector.shape_cast %180 : vector<8xf32> to vector<8x1xf32>
    %cst_72 = arith.constant 3.200000e+01 : f32
    %182 = vector.broadcast %cst_72 : f32 to vector<8x1xf32>
    %183 = arith.divf %181, %182 : vector<8x1xf32>
    %184 = math.sqrt %183 : vector<8x1xf32>
    %c0_73 = arith.constant 0 : index
    %c0_74 = arith.constant 0 : index
    %c0_75 = arith.constant 0 : index
    %185 = vector.load %arg13[%c0_73, %c0_74, %c0_75] : memref<1x1x32xf32, #tpu.memory_space<vmem>>, vector<1x1x32xf32>
    %186 = vector.shape_cast %185 : vector<1x1x32xf32> to vector<1x32xf32>
    %187 = vector.broadcast %186 : vector<1x32xf32> to vector<8x32xf32>
    %188 = arith.mulf %187, %178 : vector<8x32xf32>
    %cst_76 = arith.constant 1.000000e-10 : f32
    %189 = vector.broadcast %cst_76 : f32 to vector<8x1xf32>
    %190 = arith.addf %184, %189 : vector<8x1xf32>
    %191 = vector.broadcast %190 : vector<8x1xf32> to vector<8x32xf32>
    %192 = arith.divf %188, %191 : vector<8x32xf32>
    %c0_77 = arith.constant 0 : index
    %c0_78 = arith.constant 0 : index
    %c0_79 = arith.constant 0 : index
    %193 = vector.load %arg14[%c0_77, %c0_78, %c0_79] : memref<1x1x32xf32, #tpu.memory_space<vmem>>, vector<1x1x32xf32>
    %194 = vector.shape_cast %193 : vector<1x1x32xf32> to vector<1x32xf32>
    %195 = vector.broadcast %194 : vector<1x32xf32> to vector<8x32xf32>
    %196 = arith.addf %192, %195 : vector<8x32xf32>
    %197 = vector.shape_cast %196 : vector<8x32xf32> to vector<1x8x32xf32>
    %c0_80 = arith.constant 0 : index
    %c0_81 = arith.constant 0 : index
    %c0_82 = arith.constant 0 : index
    %198 = vector.load %arg15[%c0_80, %c0_81, %c0_82] : memref<1x8x32xf32, #tpu.memory_space<vmem>>, vector<1x8x32xf32>
    tpu.vector_store %arg15[%c0_80, %c0_81, %c0_82], %197 {strides = array<i32>} : memref<1x8x32xf32, #tpu.memory_space<vmem>>, vector<1x8x32xf32>,
    return
  }
  func.func @transform_0(%arg0: i32, %arg1: i32) -> (i32, i32, i32) {
    %c0_i32 = arith.constant 0 : i32
    %c0_i32_0 = arith.constant 0 : i32
    %c0_i32_1 = arith.constant 0 : i32
    return %arg0, %c0_i32, %c0_i32_0 : i32, i32, i32
  }
  func.func @transform_1(%arg0: i32, %arg1: i32) -> (i32, i32, i32) {
    %c0_i32 = arith.constant 0 : i32
    %c0_i32_0 = arith.constant 0 : i32
    %c0_i32_1 = arith.constant 0 : i32
    return %arg1, %c0_i32, %c0_i32_0 : i32, i32, i32
  }
  func.func @transform_2(%arg0: i32, %arg1: i32) -> (i32, i32, i32) {
    %c0_i32 = arith.constant 0 : i32
    %c0_i32_0 = arith.constant 0 : i32
    %c0_i32_1 = arith.constant 0 : i32
    return %arg1, %c0_i32, %c0_i32_0 : i32, i32, i32
  }
  func.func @transform_3(%arg0: i32, %arg1: i32) -> (i32, i32, i32) {
    %c0_i32 = arith.constant 0 : i32
    %c0_i32_0 = arith.constant 0 : i32
    %c0_i32_1 = arith.constant 0 : i32
    return %arg1, %c0_i32, %c0_i32_0 : i32, i32, i32
  }
  func.func @transform_4(%arg0: i32, %arg1: i32) -> (i32, i32, i32) {
    %c0_i32 = arith.constant 0 : i32
    %c0_i32_0 = arith.constant 0 : i32
    %c0_i32_1 = arith.constant 0 : i32
    return %arg1, %c0_i32, %c0_i32_0 : i32, i32, i32
  }
  func.func @transform_5(%arg0: i32, %arg1: i32) -> (i32, i32, i32) {
    %c0_i32 = arith.constant 0 : i32
    %c0_i32_0 = arith.constant 0 : i32
    %c0_i32_1 = arith.constant 0 : i32
    return %arg1, %c0_i32, %c0_i32_0 : i32, i32, i32
  }
  func.func @transform_6(%arg0: i32, %arg1: i32) -> (i32, i32, i32) {
    %c0_i32 = arith.constant 0 : i32
    %c0_i32_0 = arith.constant 0 : i32
    %c0_i32_1 = arith.constant 0 : i32
    return %arg1, %c0_i32, %c0_i32_0 : i32, i32, i32
  }
  func.func @transform_7(%arg0: i32, %arg1: i32) -> (i32, i32, i32) {
    %c0_i32 = arith.constant 0 : i32
    %c0_i32_0 = arith.constant 0 : i32
    %c0_i32_1 = arith.constant 0 : i32
    return %arg1, %c0_i32, %c0_i32_0 : i32, i32, i32
  }
  func.func @transform_8(%arg0: i32, %arg1: i32) -> (i32, i32, i32) {
    %c0_i32 = arith.constant 0 : i32
    %c0_i32_0 = arith.constant 0 : i32
    %c0_i32_1 = arith.constant 0 : i32
    return %arg1, %c0_i32, %c0_i32_0 : i32, i32, i32
  }
  func.func @transform_9(%arg0: i32, %arg1: i32) -> (i32, i32, i32) {
    %c0_i32 = arith.constant 0 : i32
    %c0_i32_0 = arith.constant 0 : i32
    %c0_i32_1 = arith.constant 0 : i32
    return %arg1, %c0_i32, %c0_i32_0 : i32, i32, i32
  }
  func.func @transform_10(%arg0: i32, %arg1: i32) -> (i32, i32, i32) {
    %c0_i32 = arith.constant 0 : i32
    %c0_i32_0 = arith.constant 0 : i32
    %c0_i32_1 = arith.constant 0 : i32
    return %arg1, %c0_i32, %c0_i32_0 : i32, i32, i32
  }
  func.func @transform_11(%arg0: i32, %arg1: i32) -> (i32, i32, i32) {
    %c0_i32 = arith.constant 0 : i32
    %c0_i32_0 = arith.constant 0 : i32
    %c0_i32_1 = arith.constant 0 : i32
    return %arg1, %c0_i32, %c0_i32_0 : i32, i32, i32
  }
  func.func @transform_12(%arg0: i32, %arg1: i32) -> (i32, i32, i32) {
    %c0_i32 = arith.constant 0 : i32
    %c0_i32_0 = arith.constant 0 : i32
    %c0_i32_1 = arith.constant 0 : i32
    return %arg1, %c0_i32, %c0_i32_0 : i32, i32, i32
  }
  func.func @transform_13(%arg0: i32, %arg1: i32) -> (i32, i32, i32) {
    %c0_i32 = arith.constant 0 : i32
    %c0_i32_0 = arith.constant 0 : i32
    %c0_i32_1 = arith.constant 0 : i32
    return %arg0, %c0_i32, %c0_i32_0 : i32, i32, i32
  }
}

</mosaic_0001>

<llo_original>
// kernel: tpu_custom_call.1
$region0: #{tpu_custom_call.1}
  #allocation0 [shape = 'u32[]', space=smem, size = 0x4, offset = 0x4, fixed_abs, tag = 'smem constant byte address 0x4 - core index']
  #allocation1 [shape = 'u32[144,128]{1,0:T(1,128)}', space=vmem, size = 0x12000, scoped, tag = 'internal scratch']
  #allocation2 [shape = 'bf16[8,32]{1,0:T(8,128)(2,1)}', space=vmem, size = 0x800, scoped, tag = 'scratch operand']
  %s0 = inlined_call_operand.hbm [shape: f32[2,8,32], index: 0, kind: input, shape index: {}, may-alias: {0,13}]
  %s1 = inlined_call_operand.vmem [shape: bf16[2,32,96], index: 1, kind: input, shape index: {}]
  %s2 = inlined_call_operand.vmem [shape: f32[2,1,96], index: 2, kind: input, shape index: {}]
  %s3 = inlined_call_operand.vmem [shape: bf16[2,32,32], index: 3, kind: input, shape index: {}]
  %s4 = inlined_call_operand.vmem [shape: f32[2,1,32], index: 4, kind: input, shape index: {}]
  %s5 = inlined_call_operand.vmem [shape: f32[2,1,32], index: 5, kind: input, shape index: {}]
  %s6 = inlined_call_operand.vmem [shape: f32[2,1,32], index: 6, kind: input, shape index: {}]
  %s7 = inlined_call_operand.vmem [shape: bf16[2,32,64], index: 7, kind: input, shape index: {}]
  %s8 = inlined_call_operand.vmem [shape: f32[2,1,64], index: 8, kind: input, shape index: {}]
  %s9 = inlined_call_operand.vmem [shape: bf16[2,64,32], index: 9, kind: input, shape index: {}]
  %s10 = inlined_call_operand.vmem [shape: f32[2,1,32], index: 10, kind: input, shape index: {}]
  %s11 = inlined_call_operand.vmem [shape: f32[2,1,32], index: 11, kind: input, shape index: {}]
  %s12 = inlined_call_operand.vmem [shape: f32[2,1,32], index: 12, kind: input, shape index: {}]
  %s13 = inlined_call_operand.hbm [shape: f32[2,8,32], index: 13, kind: output, shape index: {}, may-alias: {0,13}]
  %s14 = sld [smem:[#allocation0]]
  $region93: #{tpu_custom_call.1} parent=0
    _
  %s16 = ssub.s32 1, %s14
  %s17 = scalar_select 0, %s16, %s14
  $region1: #{tpu_custom_call.1} parent=0
    #allocation3 [shape = 'u8[8192]{0}', space=vmem, size = 0x2000, scoped, tag = 'input window, operand 0']
    #allocation4 [shape = 's32[2]{0}', space=sflag, size = 0x8, scoped, tag = 'scoped memory for tpu_custom_call.1']
    #allocation5 [shape = 's32[2]{0}', space=sflag, size = 0x8, scoped, tag = 'scoped memory for tpu_custom_call.1']
    #allocation6 [shape = 'u8[8192]{0}', space=vmem, size = 0x2000, scoped, tag = 'output window, operand 0']
    %18 = vsyncpa [#allocation4], 0
    %s19 = scalar_lea.sflag [#allocation4], 1
    %20 = vsyncpa %s19, 0
    %21 = vsyncpa [#allocation5], 0
    %s22 = scalar_lea.sflag [#allocation5], 1
    %23 = vsyncpa %s22, 0
    loop: start=0, step=1, limit=6
    $region2: #{tpu_custom_call.1} parent=1 // loop_pre_header
      _
    $region3: #{tpu_custom_call.1} parent=1 // loop_header
      %s25 = sphi 0, %s29
      %p26 = scmp.ge.s32.totalorder %s25, 6
      %s32 = sphi 0, %s44
      %s33 = sphi 0, %s40
      %s34 = sphi 0, %s32
      %s35 = sphi 0, %s33
      %s36 = sphi 0, %s34
      %s37 = sphi 0, %s35
      %s47 = sphi 0, %s49
      %s50 = sphi 0, %s47
      %s51 = sphi 0, %s50
      %s67 = sphi 0, %s51
      %s73 = sphi 0, %s75
      %s76 = sphi 0, %s73
      %s77 = sphi 0, %s76
      %s93 = sphi 0, %s77
      %s99 = sphi 0, %s101
      %s102 = sphi 0, %s99
      %s103 = sphi 0, %s102
      %s119 = sphi 0, %s103
      %s125 = sphi 0, %s127
      %s128 = sphi 0, %s125
      %s129 = sphi 0, %s128
      %s145 = sphi 0, %s129
      %s151 = sphi 0, %s153
      %s154 = sphi 0, %s151
      %s155 = sphi 0, %s154
      %s171 = sphi 0, %s155
      %s177 = sphi 0, %s179
      %s180 = sphi 0, %s177
      %s181 = sphi 0, %s180
      %s197 = sphi 0, %s181
      %s203 = sphi 0, %s205
      %s206 = sphi 0, %s203
      %s207 = sphi 0, %s206
      %s223 = sphi 0, %s207
      %s229 = sphi 0, %s231
      %s232 = sphi 0, %s229
      %s233 = sphi 0, %s232
      %s249 = sphi 0, %s233
      %s255 = sphi 0, %s257
      %s258 = sphi 0, %s255
      %s259 = sphi 0, %s258
      %s275 = sphi 0, %s259
      %s281 = sphi 0, %s283
      %s284 = sphi 0, %s281
      %s285 = sphi 0, %s284
      %s301 = sphi 0, %s285
      %s307 = sphi 0, %s309
      %s310 = sphi 0, %s307
      %s311 = sphi 0, %s310
      %s327 = sphi 0, %s311
      %s333 = sphi 0, %s335
      %s336 = sphi 0, %s333
      %s337 = sphi 0, %s336
      %s353 = sphi 0, %s337
      %s359 = sphi 0, %s361
      %s362 = sphi 0, %s359
      %s363 = sphi 0, %s362
      %s379 = sphi 0, %s363
      %s385 = sphi 0, %s387
      %s388 = sphi 0, %s385
      %s389 = sphi 0, %s388
      %s405 = sphi 0, %s389
    $region4: #{tpu_custom_call.1} parent=1 // loop_header_branch
      %28 = sbr.rel (%p26) target = $region8
    $region5: #{tpu_custom_call.1} parent=1 // loop_body
      %s30 = ssub.s32 %s25, 1
      %s31 = ssub.s32 %s25, 2
      %s38 = sadd.s32 1, %s33
      %p39 = scmp.ge.s32.totalorder %s38, 2
      %s40 = scalar_select %p39, 0, %s38
      %s41 = sadd.s32 1, %s32
      %s42 = scalar_select %p39, %s41, %s32
      %p43 = scmp.ge.s32.totalorder %s42, 2
      %s44 = scalar_select %p43, 0, %s42
      %s45 = ssub.s32 %s32, %s44
      %p46 = scmp.eq.s32.totalorder %s45, 0
      %s48 = sadd.s32 %s47, 1
      %s49 = scalar_select %p46, %s47, %s48
      %p52 = pneg %p46
      %p53 = scmp.eq.s32.totalorder %s25, 3
      %p54 = por %p52, %p53
      %p55 = scmp.ne.s32.totalorder %s47, %s50
      %p56 = scmp.eq.s32.totalorder %s25, 0
      %p57 = por %p55, %p56
      %p58 = scmp.ne.s32.totalorder %s47, %s50
      %p59 = scmp.eq.s32.totalorder %s30, 3
      %p60 = por %p58, %p59
      %p61 = scmp.ne.s32.totalorder %s50, %s51
      %p62 = scmp.eq.s32.totalorder %s30, 0
      %p63 = por %p61, %p62
      %p64 = scmp.ne.s32.totalorder %s50, %s51
      %p65 = scmp.eq.s32.totalorder %s31, 3
      %p66 = por %p64, %p65
      %p68 = scmp.ne.s32.totalorder %s51, %s67
      %p69 = scmp.eq.s32.totalorder %s31, 0
      %p70 = por %p68, %p69
      %s71 = ssub.s32 %s33, %s40
      %p72 = scmp.eq.s32.totalorder %s71, 0
      %s74 = sadd.s32 %s73, 1
      %s75 = scalar_select %p72, %s73, %s74
      %p78 = pneg %p72
      %p79 = scmp.eq.s32.totalorder %s25, 3
      %p80 = por %p78, %p79
      %p81 = scmp.ne.s32.totalorder %s73, %s76
      %p82 = scmp.eq.s32.totalorder %s25, 0
      %p83 = por %p81, %p82
      %p84 = scmp.ne.s32.totalorder %s73, %s76
      %p85 = scmp.eq.s32.totalorder %s30, 3
      %p86 = por %p84, %p85
      %p87 = scmp.ne.s32.totalorder %s76, %s77
      %p88 = scmp.eq.s32.totalorder %s30, 0
      %p89 = por %p87, %p88
      %p90 = scmp.ne.s32.totalorder %s76, %s77
      %p91 = scmp.eq.s32.totalorder %s31, 3
      %p92 = por %p90, %p91
      %p94 = scmp.ne.s32.totalorder %s77, %s93
      %p95 = scmp.eq.s32.totalorder %s31, 0
      %p96 = por %p94, %p95
      %s97 = ssub.s32 %s33, %s40
      %p98 = scmp.eq.s32.totalorder %s97, 0
      %s100 = sadd.s32 %s99, 1
      %s101 = scalar_select %p98, %s99, %s100
      %p104 = pneg %p98
      %p105 = scmp.eq.s32.totalorder %s25, 3
      %p106 = por %p104, %p105
      %p107 = scmp.ne.s32.totalorder %s99, %s102
      %p108 = scmp.eq.s32.totalorder %s25, 0
      %p109 = por %p107, %p108
      %p110 = scmp.ne.s32.totalorder %s99, %s102
      %p111 = scmp.eq.s32.totalorder %s30, 3
      %p112 = por %p110, %p111
      %p113 = scmp.ne.s32.totalorder %s102, %s103
      %p114 = scmp.eq.s32.totalorder %s30, 0
      %p115 = por %p113, %p114
      %p116 = scmp.ne.s32.totalorder %s102, %s103
      %p117 = scmp.eq.s32.totalorder %s31, 3
      %p118 = por %p116, %p117
      %p120 = scmp.ne.s32.totalorder %s103, %s119
      %p121 = scmp.eq.s32.totalorder %s31, 0
      %p122 = por %p120, %p121
      %s123 = ssub.s32 %s33, %s40
      %p124 = scmp.eq.s32.totalorder %s123, 0
      %s126 = sadd.s32 %s125, 1
      %s127 = scalar_select %p124, %s125, %s126
      %p130 = pneg %p124
      %p131 = scmp.eq.s32.totalorder %s25, 3
      %p132 = por %p130, %p131
      %p133 = scmp.ne.s32.totalorder %s125, %s128
      %p134 = scmp.eq.s32.totalorder %s25, 0
      %p135 = por %p133, %p134
      %p136 = scmp.ne.s32.totalorder %s125, %s128
      %p137 = scmp.eq.s32.totalorder %s30, 3
      %p138 = por %p136, %p137
      %p139 = scmp.ne.s32.totalorder %s128, %s129
      %p140 = scmp.eq.s32.totalorder %s30, 0
      %p141 = por %p139, %p140
      %p142 = scmp.ne.s32.totalorder %s128, %s129
      %p143 = scmp.eq.s32.totalorder %s31, 3
      %p144 = por %p142, %p143
      %p146 = scmp.ne.s32.totalorder %s129, %s145
      %p147 = scmp.eq.s32.totalorder %s31, 0
      %p148 = por %p146, %p147
      %s149 = ssub.s32 %s33, %s40
      %p150 = scmp.eq.s32.totalorder %s149, 0
      %s152 = sadd.s32 %s151, 1
      %s153 = scalar_select %p150, %s151, %s152
      %p156 = pneg %p150
      %p157 = scmp.eq.s32.totalorder %s25, 3
      %p158 = por %p156, %p157
      %p159 = scmp.ne.s32.totalorder %s151, %s154
      %p160 = scmp.eq.s32.totalorder %s25, 0
      %p161 = por %p159, %p160
      %p162 = scmp.ne.s32.totalorder %s151, %s154
      %p163 = scmp.eq.s32.totalorder %s30, 3
      %p164 = por %p162, %p163
      %p165 = scmp.ne.s32.totalorder %s154, %s155
      %p166 = scmp.eq.s32.totalorder %s30, 0
      %p167 = por %p165, %p166
      %p168 = scmp.ne.s32.totalorder %s154, %s155
      %p169 = scmp.eq.s32.totalorder %s31, 3
      %p170 = por %p168, %p169
      %p172 = scmp.ne.s32.totalorder %s155, %s171
      %p173 = scmp.eq.s32.totalorder %s31, 0
      %p174 = por %p172, %p173
      %s175 = ssub.s32 %s33, %s40
      %p176 = scmp.eq.s32.totalorder %s175, 0
      %s178 = sadd.s32 %s177, 1
      %s179 = scalar_select %p176, %s177, %s178
      %p182 = pneg %p176
      %p183 = scmp.eq.s32.totalorder %s25, 3
      %p184 = por %p182, %p183
      %p185 = scmp.ne.s32.totalorder %s177, %s180
      %p186 = scmp.eq.s32.totalorder %s25, 0
      %p187 = por %p185, %p186
      %p188 = scmp.ne.s32.totalorder %s177, %s180
      %p189 = scmp.eq.s32.totalorder %s30, 3
      %p190 = por %p188, %p189
      %p191 = scmp.ne.s32.totalorder %s180, %s181
      %p192 = scmp.eq.s32.totalorder %s30, 0
      %p193 = por %p191, %p192
      %p194 = scmp.ne.s32.totalorder %s180, %s181
      %p195 = scmp.eq.s32.totalorder %s31, 3
      %p196 = por %p194, %p195
      %p198 = scmp.ne.s32.totalorder %s181, %s197
      %p199 = scmp.eq.s32.totalorder %s31, 0
      %p200 = por %p198, %p199
      %s201 = ssub.s32 %s33, %s40
      %p202 = scmp.eq.s32.totalorder %s201, 0
      %s204 = sadd.s32 %s203, 1
      %s205 = scalar_select %p202, %s203, %s204
      %p208 = pneg %p202
      %p209 = scmp.eq.s32.totalorder %s25, 3
      %p210 = por %p208, %p209
      %p211 = scmp.ne.s32.totalorder %s203, %s206
      %p212 = scmp.eq.s32.totalorder %s25, 0
      %p213 = por %p211, %p212
      %p214 = scmp.ne.s32.totalorder %s203, %s206
      %p215 = scmp.eq.s32.totalorder %s30, 3
      %p216 = por %p214, %p215
      %p217 = scmp.ne.s32.totalorder %s206, %s207
      %p218 = scmp.eq.s32.totalorder %s30, 0
      %p219 = por %p217, %p218
      %p220 = scmp.ne.s32.totalorder %s206, %s207
      %p221 = scmp.eq.s32.totalorder %s31, 3
      %p222 = por %p220, %p221
      %p224 = scmp.ne.s32.totalorder %s207, %s223
      %p225 = scmp.eq.s32.totalorder %s31, 0
      %p226 = por %p224, %p225
      %s227 = ssub.s32 %s33, %s40
      %p228 = scmp.eq.s32.totalorder %s227, 0
      %s230 = sadd.s32 %s229, 1
      %s231 = scalar_select %p228, %s229, %s230
      %p234 = pneg %p228
      %p235 = scmp.eq.s32.totalorder %s25, 3
      %p236 = por %p234, %p235
      %p237 = scmp.ne.s32.totalorder %s229, %s232
      %p238 = scmp.eq.s32.totalorder %s25, 0
      %p239 = por %p237, %p238
      %p240 = scmp.ne.s32.totalorder %s229, %s232
      %p241 = scmp.eq.s32.totalorder %s30, 3
      %p242 = por %p240, %p241
      %p243 = scmp.ne.s32.totalorder %s232, %s233
      %p244 = scmp.eq.s32.totalorder %s30, 0
      %p245 = por %p243, %p244
      %p246 = scmp.ne.s32.totalorder %s232, %s233
      %p247 = scmp.eq.s32.totalorder %s31, 3
      %p248 = por %p246, %p247
      %p250 = scmp.ne.s32.totalorder %s233, %s249
      %p251 = scmp.eq.s32.totalorder %s31, 0
      %p252 = por %p250, %p251
      %s253 = ssub.s32 %s33, %s40
      %p254 = scmp.eq.s32.totalorder %s253, 0
      %s256 = sadd.s32 %s255, 1
      %s257 = scalar_select %p254, %s255, %s256
      %p260 = pneg %p254
      %p261 = scmp.eq.s32.totalorder %s25, 3
      %p262 = por %p260, %p261
      %p263 = scmp.ne.s32.totalorder %s255, %s258
      %p264 = scmp.eq.s32.totalorder %s25, 0
      %p265 = por %p263, %p264
      %p266 = scmp.ne.s32.totalorder %s255, %s258
      %p267 = scmp.eq.s32.totalorder %s30, 3
      %p268 = por %p266, %p267
      %p269 = scmp.ne.s32.totalorder %s258, %s259
      %p270 = scmp.eq.s32.totalorder %s30, 0
      %p271 = por %p269, %p270
      %p272 = scmp.ne.s32.totalorder %s258, %s259
      %p273 = scmp.eq.s32.totalorder %s31, 3
      %p274 = por %p272, %p273
      %p276 = scmp.ne.s32.totalorder %s259, %s275
      %p277 = scmp.eq.s32.totalorder %s31, 0
      %p278 = por %p276, %p277
      %s279 = ssub.s32 %s33, %s40
      %p280 = scmp.eq.s32.totalorder %s279, 0
      %s282 = sadd.s32 %s281, 1
      %s283 = scalar_select %p280, %s281, %s282
      %p286 = pneg %p280
      %p287 = scmp.eq.s32.totalorder %s25, 3
      %p288 = por %p286, %p287
      %p289 = scmp.ne.s32.totalorder %s281, %s284
      %p290 = scmp.eq.s32.totalorder %s25, 0
      %p291 = por %p289, %p290
      %p292 = scmp.ne.s32.totalorder %s281, %s284
      %p293 = scmp.eq.s32.totalorder %s30, 3
      %p294 = por %p292, %p293
      %p295 = scmp.ne.s32.totalorder %s284, %s285
      %p296 = scmp.eq.s32.totalorder %s30, 0
      %p297 = por %p295, %p296
      %p298 = scmp.ne.s32.totalorder %s284, %s285
      %p299 = scmp.eq.s32.totalorder %s31, 3
      %p300 = por %p298, %p299
      %p302 = scmp.ne.s32.totalorder %s285, %s301
      %p303 = scmp.eq.s32.totalorder %s31, 0
      %p304 = por %p302, %p303
      %s305 = ssub.s32 %s33, %s40
      %p306 = scmp.eq.s32.totalorder %s305, 0
      %s308 = sadd.s32 %s307, 1
      %s309 = scalar_select %p306, %s307, %s308
      %p312 = pneg %p306
      %p313 = scmp.eq.s32.totalorder %s25, 3
      %p314 = por %p312, %p313
      %p315 = scmp.ne.s32.totalorder %s307, %s310
      %p316 = scmp.eq.s32.totalorder %s25, 0
      %p317 = por %p315, %p316
      %p318 = scmp.ne.s32.totalorder %s307, %s310
      %p319 = scmp.eq.s32.totalorder %s30, 3
      %p320 = por %p318, %p319
      %p321 = scmp.ne.s32.totalorder %s310, %s311
      %p322 = scmp.eq.s32.totalorder %s30, 0
      %p323 = por %p321, %p322
      %p324 = scmp.ne.s32.totalorder %s310, %s311
      %p325 = scmp.eq.s32.totalorder %s31, 3
      %p326 = por %p324, %p325
      %p328 = scmp.ne.s32.totalorder %s311, %s327
      %p329 = scmp.eq.s32.totalorder %s31, 0
      %p330 = por %p328, %p329
      %s331 = ssub.s32 %s33, %s40
      %p332 = scmp.eq.s32.totalorder %s331, 0
      %s334 = sadd.s32 %s333, 1
      %s335 = scalar_select %p332, %s333, %s334
      %p338 = pneg %p332
      %p339 = scmp.eq.s32.totalorder %s25, 3
      %p340 = por %p338, %p339
      %p341 = scmp.ne.s32.totalorder %s333, %s336
      %p342 = scmp.eq.s32.totalorder %s25, 0
      %p343 = por %p341, %p342
      %p344 = scmp.ne.s32.totalorder %s333, %s336
      %p345 = scmp.eq.s32.totalorder %s30, 3
      %p346 = por %p344, %p345
      %p347 = scmp.ne.s32.totalorder %s336, %s337
      %p348 = scmp.eq.s32.totalorder %s30, 0
      %p349 = por %p347, %p348
      %p350 = scmp.ne.s32.totalorder %s336, %s337
      %p351 = scmp.eq.s32.totalorder %s31, 3
      %p352 = por %p350, %p351
      %p354 = scmp.ne.s32.totalorder %s337, %s353
      %p355 = scmp.eq.s32.totalorder %s31, 0
      %p356 = por %p354, %p355
      %s357 = ssub.s32 %s33, %s40
      %p358 = scmp.eq.s32.totalorder %s357, 0
      %s360 = sadd.s32 %s359, 1
      %s361 = scalar_select %p358, %s359, %s360
      %p364 = pneg %p358
      %p365 = scmp.eq.s32.totalorder %s25, 3
      %p366 = por %p364, %p365
      %p367 = scmp.ne.s32.totalorder %s359, %s362
      %p368 = scmp.eq.s32.totalorder %s25, 0
      %p369 = por %p367, %p368
      %p370 = scmp.ne.s32.totalorder %s359, %s362
      %p371 = scmp.eq.s32.totalorder %s30, 3
      %p372 = por %p370, %p371
      %p373 = scmp.ne.s32.totalorder %s362, %s363
      %p374 = scmp.eq.s32.totalorder %s30, 0
      %p375 = por %p373, %p374
      %p376 = scmp.ne.s32.totalorder %s362, %s363
      %p377 = scmp.eq.s32.totalorder %s31, 3
      %p378 = por %p376, %p377
      %p380 = scmp.ne.s32.totalorder %s363, %s379
      %p381 = scmp.eq.s32.totalorder %s31, 0
      %p382 = por %p380, %p381
      %s383 = ssub.s32 %s32, %s44
      %p384 = scmp.eq.s32.totalorder %s383, 0
      %s386 = sadd.s32 %s385, 1
      %s387 = scalar_select %p384, %s385, %s386
      %p390 = pneg %p384
      %p391 = scmp.eq.s32.totalorder %s25, 3
      %p392 = por %p390, %p391
      %p393 = scmp.ne.s32.totalorder %s385, %s388
      %p394 = scmp.eq.s32.totalorder %s25, 0
      %p395 = por %p393, %p394
      %p396 = scmp.ne.s32.totalorder %s385, %s388
      %p397 = scmp.eq.s32.totalorder %s30, 3
      %p398 = por %p396, %p397
      %p399 = scmp.ne.s32.totalorder %s388, %s389
      %p400 = scmp.eq.s32.totalorder %s30, 0
      %p401 = por %p399, %p400
      %p402 = scmp.ne.s32.totalorder %s388, %s389
      %p403 = scmp.eq.s32.totalorder %s31, 3
      %p404 = por %p402, %p403
      %p406 = scmp.ne.s32.totalorder %s389, %s405
      %p407 = scmp.eq.s32.totalorder %s31, 0
      %p408 = por %p406, %p407
      %p409 = scmp.le.s32.totalorder 1, %s25
      %p410 = scmp.lt.s32.totalorder %s25, 5
      %p411 = pnand %p409, %p410
      %p412 = pneg %p411
      // Predicated region
      $region9: #{tpu_custom_call.1} parent=5 // pred_check
        _
      $region10: #{tpu_custom_call.1} parent=5 // pred_check_branch
        %414 = sbr.rel (%p411) target = $region12
      $region11: #{tpu_custom_call.1} parent=5 // pred_region
        %s415 = ssub.s32 %s25, 1
      $region12: #{tpu_custom_call.1} parent=5 // pred_fallthru
        _
      %p416 = scmp.lt.s32.totalorder %s25, 4
      // Predicated region
      $region13: #{tpu_custom_call.1} parent=5 // pred_check
        %p417 = pneg %p416
      $region14: #{tpu_custom_call.1} parent=5 // pred_check_branch
        %419 = sbr.rel (%p417) target = $region16
      $region15: #{tpu_custom_call.1} parent=5 // pred_region
        // Predicated region
        $region17: #{tpu_custom_call.1} parent=15 // pred_check
          %p420 = pneg %p57
        $region18: #{tpu_custom_call.1} parent=15 // pred_check_branch
          %422 = sbr.rel (%p420) target = $region20
        $region19: #{tpu_custom_call.1} parent=15 // pred_region
          %s423 = sand.u32 %s47, 1
          %s424 = scalar_lea.sflag [#allocation4], %s423
          %s425 = sand.u32 %s47, 1
          %s426 = smul.addr %s425, 8
          %s427 = scalar_lea.vmem [#allocation3], %s426
          %s429 = ssub.s32 128, 128
          %430 = vsyncadd %s424, %s429
          %s431 = smul.addr %s32, 128
          %s432 = scalar_lea.hbm %s0, %s431
          %s434 = sshll.u32 %s427, 4
          %s435 = int_to_ptr.vmem [resolvable:$true] %s434
          %437 = dma.hbm_to_vmem [thread:$0]  %s432, 128, %s435, %s424
        $region20: #{tpu_custom_call.1} parent=15 // pred_fallthru
          _
        // Predicated region
        $region21: #{tpu_custom_call.1} parent=15 // pred_check
          %p438 = pneg %p83
        $region22: #{tpu_custom_call.1} parent=15 // pred_check_branch
          %440 = sbr.rel (%p438) target = $region24
        $region23: #{tpu_custom_call.1} parent=15 // pred_region
          %p441 = scmp.lt.s32.totalorder %s33, 1
          %s442 = scalar_select %p441, %s33, 1
          %s443 = smul.addr %s442, 4
          %s444 = smul.addr %s443, 4
          %s445 = scalar_lea.vmem %s1, %s444
        $region24: #{tpu_custom_call.1} parent=15 // pred_fallthru
          _
        // Predicated region
        $region25: #{tpu_custom_call.1} parent=15 // pred_check
          %p446 = pneg %p109
        $region26: #{tpu_custom_call.1} parent=15 // pred_check_branch
          %448 = sbr.rel (%p446) target = $region28
        $region27: #{tpu_custom_call.1} parent=15 // pred_region
          %p449 = scmp.lt.s32.totalorder %s33, 1
          %s450 = scalar_select %p449, %s33, 1
          %s451 = scalar_lea.vmem %s2, %s450
        $region28: #{tpu_custom_call.1} parent=15 // pred_fallthru
          _
        // Predicated region
        $region29: #{tpu_custom_call.1} parent=15 // pred_check
          %p452 = pneg %p135
        $region30: #{tpu_custom_call.1} parent=15 // pred_check_branch
          %454 = sbr.rel (%p452) target = $region32
        $region31: #{tpu_custom_call.1} parent=15 // pred_region
          %p455 = scmp.lt.s32.totalorder %s33, 1
          %s456 = scalar_select %p455, %s33, 1
          %s457 = smul.addr %s456, 4
          %s458 = smul.addr %s457, 4
          %s459 = scalar_lea.vmem %s3, %s458
        $region32: #{tpu_custom_call.1} parent=15 // pred_fallthru
          _
        // Predicated region
        $region33: #{tpu_custom_call.1} parent=15 // pred_check
          %p460 = pneg %p161
        $region34: #{tpu_custom_call.1} parent=15 // pred_check_branch
          %462 = sbr.rel (%p460) target = $region36
        $region35: #{tpu_custom_call.1} parent=15 // pred_region
          %p463 = scmp.lt.s32.totalorder %s33, 1
          %s464 = scalar_select %p463, %s33, 1
          %s465 = scalar_lea.vmem %s4, %s464
        $region36: #{tpu_custom_call.1} parent=15 // pred_fallthru
          _
        // Predicated region
        $region37: #{tpu_custom_call.1} parent=15 // pred_check
          %p466 = pneg %p187
        $region38: #{tpu_custom_call.1} parent=15 // pred_check_branch
          %468 = sbr.rel (%p466) target = $region40
        $region39: #{tpu_custom_call.1} parent=15 // pred_region
          %p469 = scmp.lt.s32.totalorder %s33, 1
          %s470 = scalar_select %p469, %s33, 1
          %s471 = scalar_lea.vmem %s5, %s470
        $region40: #{tpu_custom_call.1} parent=15 // pred_fallthru
          _
        // Predicated region
        $region41: #{tpu_custom_call.1} parent=15 // pred_check
          %p472 = pneg %p213
        $region42: #{tpu_custom_call.1} parent=15 // pred_check_branch
          %474 = sbr.rel (%p472) target = $region44
        $region43: #{tpu_custom_call.1} parent=15 // pred_region
          %p475 = scmp.lt.s32.totalorder %s33, 1
          %s476 = scalar_select %p475, %s33, 1
          %s477 = scalar_lea.vmem %s6, %s476
        $region44: #{tpu_custom_call.1} parent=15 // pred_fallthru
          _
        // Predicated region
        $region45: #{tpu_custom_call.1} parent=15 // pred_check
          %p478 = pneg %p239
        $region46: #{tpu_custom_call.1} parent=15 // pred_check_branch
          %480 = sbr.rel (%p478) target = $region48
        $region47: #{tpu_custom_call.1} parent=15 // pred_region
          %p481 = scmp.lt.s32.totalorder %s33, 1
          %s482 = scalar_select %p481, %s33, 1
          %s483 = smul.addr %s482, 4
          %s484 = smul.addr %s483, 4
          %s485 = scalar_lea.vmem %s7, %s484
        $region48: #{tpu_custom_call.1} parent=15 // pred_fallthru
          _
        // Predicated region
        $region49: #{tpu_custom_call.1} parent=15 // pred_check
          %p486 = pneg %p265
        $region50: #{tpu_custom_call.1} parent=15 // pred_check_branch
          %488 = sbr.rel (%p486) target = $region52
        $region51: #{tpu_custom_call.1} parent=15 // pred_region
          %p489 = scmp.lt.s32.totalorder %s33, 1
          %s490 = scalar_select %p489, %s33, 1
          %s491 = scalar_lea.vmem %s8, %s490
        $region52: #{tpu_custom_call.1} parent=15 // pred_fallthru
          _
        // Predicated region
        $region53: #{tpu_custom_call.1} parent=15 // pred_check
          %p492 = pneg %p291
        $region54: #{tpu_custom_call.1} parent=15 // pred_check_branch
          %494 = sbr.rel (%p492) target = $region56
        $region55: #{tpu_custom_call.1} parent=15 // pred_region
          %p495 = scmp.lt.s32.totalorder %s33, 1
          %s496 = scalar_select %p495, %s33, 1
          %s497 = smul.addr %s496, 8
          %s498 = smul.addr %s497, 4
          %s499 = scalar_lea.vmem %s9, %s498
        $region56: #{tpu_custom_call.1} parent=15 // pred_fallthru
          _
        // Predicated region
        $region57: #{tpu_custom_call.1} parent=15 // pred_check
          %p500 = pneg %p317
        $region58: #{tpu_custom_call.1} parent=15 // pred_check_branch
          %502 = sbr.rel (%p500) target = $region60
        $region59: #{tpu_custom_call.1} parent=15 // pred_region
          %p503 = scmp.lt.s32.totalorder %s33, 1
          %s504 = scalar_select %p503, %s33, 1
          %s505 = scalar_lea.vmem %s10, %s504
        $region60: #{tpu_custom_call.1} parent=15 // pred_fallthru
          _
        // Predicated region
        $region61: #{tpu_custom_call.1} parent=15 // pred_check
          %p506 = pneg %p343
        $region62: #{tpu_custom_call.1} parent=15 // pred_check_branch
          %508 = sbr.rel (%p506) target = $region64
        $region63: #{tpu_custom_call.1} parent=15 // pred_region
          %p509 = scmp.lt.s32.totalorder %s33, 1
          %s510 = scalar_select %p509, %s33, 1
          %s511 = scalar_lea.vmem %s11, %s510
        $region64: #{tpu_custom_call.1} parent=15 // pred_fallthru
          _
        // Predicated region
        $region65: #{tpu_custom_call.1} parent=15 // pred_check
          %p512 = pneg %p369
        $region66: #{tpu_custom_call.1} parent=15 // pred_check_branch
          %514 = sbr.rel (%p512) target = $region68
        $region67: #{tpu_custom_call.1} parent=15 // pred_region
          %p515 = scmp.lt.s32.totalorder %s33, 1
          %s516 = scalar_select %p515, %s33, 1
          %s517 = scalar_lea.vmem %s12, %s516
        $region68: #{tpu_custom_call.1} parent=15 // pred_fallthru
          _
      $region16: #{tpu_custom_call.1} parent=5 // pred_fallthru
        _
      %p518 = scmp.le.s32.totalorder 1, %s25
      %p519 = scmp.lt.s32.totalorder %s25, 5
      %p520 = pnand %p518, %p519
      %p521 = pneg %p520
      // Predicated region
      $region69: #{tpu_custom_call.1} parent=5 // pred_check
        _
      $region70: #{tpu_custom_call.1} parent=5 // pred_check_branch
        %523 = sbr.rel (%p520) target = $region72
      $region71: #{tpu_custom_call.1} parent=5 // pred_region
        %s524 = ssub.s32 %s25, 1
        %s525 = sand.u32 %s50, 1
        %s526 = scalar_lea.sflag [#allocation4], %s525
        %s527 = sand.u32 %s50, 1
        %s528 = smul.addr %s527, 8
        %s529 = scalar_lea.vmem [#allocation3], %s528
        // Predicated region
        $region73: #{tpu_custom_call.1} parent=71 // pred_check
          %p530 = pneg %p63
        $region74: #{tpu_custom_call.1} parent=71 // pred_check_branch
          %532 = sbr.rel (%p530) target = $region76
        $region75: #{tpu_custom_call.1} parent=71 // pred_region
          %533 = dma.done %s526, 128
        $region76: #{tpu_custom_call.1} parent=71 // pred_fallthru
          _
        %s534 = sand.u32 %s50, 1
        %s535 = scalar_lea.sflag [#allocation4], %s534
        %s536 = sand.u32 %s50, 1
        %s537 = smul.addr %s536, 8
        %s538 = scalar_lea.vmem [#allocation3], %s537
        %p539 = pneg %p63
        %p540 = pneg %p60
        %p541 = scmp.lt.s32.totalorder %s35, 1
        %s542 = scalar_select %p541, %s35, 1
        %s543 = smul.addr %s542, 4
        %s544 = smul.addr %s543, 4
        %s545 = scalar_lea.vmem %s1, %s544
        %p546 = pneg %p89
        %p547 = pneg %p86
        %p548 = scmp.lt.s32.totalorder %s35, 1
        %s549 = scalar_select %p548, %s35, 1
        %s550 = scalar_lea.vmem %s2, %s549
        %p551 = pneg %p115
        %p552 = pneg %p112
        %p553 = scmp.lt.s32.totalorder %s35, 1
        %s554 = scalar_select %p553, %s35, 1
        %s555 = smul.addr %s554, 4
        %s556 = smul.addr %s555, 4
        %s557 = scalar_lea.vmem %s3, %s556
        %p558 = pneg %p141
        %p559 = pneg %p138
        %p560 = scmp.lt.s32.totalorder %s35, 1
        %s561 = scalar_select %p560, %s35, 1
        %s562 = scalar_lea.vmem %s4, %s561
        %p563 = pneg %p167
        %p564 = pneg %p164
        %p565 = scmp.lt.s32.totalorder %s35, 1
        %s566 = scalar_select %p565, %s35, 1
        %s567 = scalar_lea.vmem %s5, %s566
        %p568 = pneg %p193
        %p569 = pneg %p190
        %p570 = scmp.lt.s32.totalorder %s35, 1
        %s571 = scalar_select %p570, %s35, 1
        %s572 = scalar_lea.vmem %s6, %s571
        %p573 = pneg %p219
        %p574 = pneg %p216
        %p575 = scmp.lt.s32.totalorder %s35, 1
        %s576 = scalar_select %p575, %s35, 1
        %s577 = smul.addr %s576, 4
        %s578 = smul.addr %s577, 4
        %s579 = scalar_lea.vmem %s7, %s578
        %p580 = pneg %p245
        %p581 = pneg %p242
        %p582 = scmp.lt.s32.totalorder %s35, 1
        %s583 = scalar_select %p582, %s35, 1
        %s584 = scalar_lea.vmem %s8, %s583
        %p585 = pneg %p271
        %p586 = pneg %p268
        %p587 = scmp.lt.s32.totalorder %s35, 1
        %s588 = scalar_select %p587, %s35, 1
        %s589 = smul.addr %s588, 8
        %s590 = smul.addr %s589, 4
        %s591 = scalar_lea.vmem %s9, %s590
        %p592 = pneg %p297
        %p593 = pneg %p294
        %p594 = scmp.lt.s32.totalorder %s35, 1
        %s595 = scalar_select %p594, %s35, 1
        %s596 = scalar_lea.vmem %s10, %s595
        %p597 = pneg %p323
        %p598 = pneg %p320
        %p599 = scmp.lt.s32.totalorder %s35, 1
        %s600 = scalar_select %p599, %s35, 1
        %s601 = scalar_lea.vmem %s11, %s600
        %p602 = pneg %p349
        %p603 = pneg %p346
        %p604 = scmp.lt.s32.totalorder %s35, 1
        %s605 = scalar_select %p604, %s35, 1
        %s606 = scalar_lea.vmem %s12, %s605
        %p607 = pneg %p375
        %p608 = pneg %p372
        %p609 = pneg %p401
        %p610 = pneg %p398
        %s611 = sand.u32 %s388, 1
        %s612 = scalar_lea.sflag [#allocation5], %s611
        %s613 = sand.u32 %s388, 1
        %s614 = smul.addr %s613, 8
        %s615 = scalar_lea.vmem [#allocation6], %s614
        %p616 = scmp.lt.s32.totalorder %s35, 1
        %s617 = scalar_select %p616, %s35, 1
        %s618 = smul.addr %s617, 4
        %s619 = smul.addr %s618, 4
        %s620 = scalar_lea.vmem %s1, %s619
        %p621 = scmp.lt.s32.totalorder %s35, 1
        %s622 = scalar_select %p621, %s35, 1
        %s623 = scalar_lea.vmem %s2, %s622
        %p624 = scmp.lt.s32.totalorder %s35, 1
        %s625 = scalar_select %p624, %s35, 1
        %s626 = smul.addr %s625, 4
        %s627 = smul.addr %s626, 4
        %s628 = scalar_lea.vmem %s3, %s627
        %p629 = scmp.lt.s32.totalorder %s35, 1
        %s630 = scalar_select %p629, %s35, 1
        %s631 = scalar_lea.vmem %s4, %s630
        %p632 = scmp.lt.s32.totalorder %s35, 1
        %s633 = scalar_select %p632, %s35, 1
        %s634 = scalar_lea.vmem %s5, %s633
        %p635 = scmp.lt.s32.totalorder %s35, 1
        %s636 = scalar_select %p635, %s35, 1
        %s637 = scalar_lea.vmem %s6, %s636
        %p638 = scmp.lt.s32.totalorder %s35, 1
        %s639 = scalar_select %p638, %s35, 1
        %s640 = smul.addr %s639, 4
        %s641 = smul.addr %s640, 4
        %s642 = scalar_lea.vmem %s7, %s641
        %p643 = scmp.lt.s32.totalorder %s35, 1
        %s644 = scalar_select %p643, %s35, 1
        %s645 = scalar_lea.vmem %s8, %s644
        %p646 = scmp.lt.s32.totalorder %s35, 1
        %s647 = scalar_select %p646, %s35, 1
        %s648 = smul.addr %s647, 8
        %s649 = smul.addr %s648, 4
        %s650 = scalar_lea.vmem %s9, %s649
        %p651 = scmp.lt.s32.totalorder %s35, 1
        %s652 = scalar_select %p651, %s35, 1
        %s653 = scalar_lea.vmem %s10, %s652
        %p654 = scmp.lt.s32.totalorder %s35, 1
        %s655 = scalar_select %p654, %s35, 1
        %s656 = scalar_lea.vmem %s11, %s655
        %p657 = scmp.lt.s32.totalorder %s35, 1
        %s658 = scalar_select %p657, %s35, 1
        %s659 = scalar_lea.vmem %s12, %s658
        %p661 = scmp.eq.s32.totalorder %s35, 0
        // Predicated region
        $region77: #{tpu_custom_call.1} parent=71 // pred_check
          %p662 = pneg %p661
        $region78: #{tpu_custom_call.1} parent=71 // pred_check_branch
          %664 = sbr.rel (%p662) target = $region80
        $region79: #{tpu_custom_call.1} parent=71 // pred_region
          %v665 = vld [vmem:[%s529] sm:$0xff]
          %vm666 = vcmask 261120
          %667 = vst.msk [vmem:[%s615] sm:$0xff] %vm666, %v665
        $region80: #{tpu_custom_call.1} parent=71 // pred_fallthru
          _
        %v668 = vld [vmem:[%s615] sm:$0xff]
        %v669 = vpack.c.bf16 %v668, %v668
        %v670 = vld [vmem:[%s620] sm:$0xf]
        %v671 = vld [vmem:[%s620 + $0x4] sm:$0xf]
        %v672 = vld [vmem:[%s620 + $0x8] sm:$0xf]
        %v673 = vld [vmem:[%s620 + $0xc] sm:$0xf]
        %v674 = vld [vmem:[%s623] sm:$0x1]
        %v676 = vlaneseq
        %v677 = vshrl.u32 %v676, 7
        %v678 = vsub.s32 0, %v677
        %v679 = vrot.slane %v674, %v678
        %v685 = vunpack.c.l.b16 %v670
        %v686 = vunpack.c.l.b16 %v671
        %v687 = vunpack.c.l.b16 %v672
        %v688 = vunpack.c.l.b16 %v673
        %v689 = vpack.c.b16 %v686, %v685
        %v690 = vpack.c.b16 %v688, %v687
        %vm693 = vcmask 261120
        %v695 = vsel %vm693, %v669, 0
        %697 = vmatprep.subr.bf16.mxu0 0
        %698 = vmatpush1.bf16.msra.mxu0 0
        %699 = vmatprep.subr.bf16.mxu0 0
        %700 = vmatpush1.bf16.msra.mxu0 0
        %701 = vmatprep.subr.bf16.mxu0 0
        %702 = vmatpush1.bf16.msra.mxu0 0
        %703 = vmatprep.subr.bf16.mxu0 0
        %704 = vmatpush1.bf16.msra.mxu0 0
        %705 = vmatprep.subr.bf16.mxu0 0
        %706 = vmatpush1.bf16.msra.mxu0 0
        %707 = vmatprep.subr.bf16.mxu0 0
        %708 = vmatpush1.bf16.msra.mxu0 0
        %709 = vmatprep.subr.bf16.mxu0 0
        %710 = vmatpush1.bf16.msra.mxu0 %v690
        %711 = vmatprep.subr.bf16.mxu0 0
        %712 = vmatpush1.bf16.msra.mxu0 %v689
        %713 = vmatprep.subr.bf16.mxu0 0
        %714 = vmatpush2.bf16.msra.mxu0 0
        %715 = vmatprep.subr.bf16.mxu0 0
        %716 = vmatpush2.bf16.msra.mxu0 0
        %717 = vmatprep.subr.bf16.mxu0 0
        %718 = vmatpush2.bf16.msra.mxu0 0
        %719 = vmatprep.subr.bf16.mxu0 0
        %720 = vmatpush2.bf16.msra.mxu0 0
        %721 = vmatprep.subr.bf16.mxu0 0
        %722 = vmatpush2.bf16.msra.mxu0 0
        %723 = vmatprep.subr.bf16.mxu0 0
        %724 = vmatpush2.bf16.msra.mxu0 0
        %725 = vmatprep.subr.bf16.mxu0 0
        %726 = vmatpush2.bf16.msra.mxu0 0
        %727 = vmatprep.subr.bf16.mxu0 0
        %728 = vmatpush2.bf16.msra.mxu0 0
        %729 = vmatprep.mubr.bf16.mxu0 0
        %730 = vmatmul.mubr.bf16.gmra.mxu0 %v695
        %v731 = vpop.f32.mrf.mxu0
        %v732 = vadd.f32 %v679, %v731
        %v733 = vpop.f32.mrf.mxu0
        %v734 = vpop.f32.mrf.mxu0
        %v735 = vpop.f32.mrf.mxu0
        %736 = vdwg.mxu0
        %v737 = vpack.c.bf16 %v732, %v732
        %739 = vrot.lane.b32.xlu0 %v737, 96
        %v740 = vpop.permute.xlu0 %739
        %vm741 = vcmask 64512
        %v743 = vsel %vm741, %v737, 0
        %v746 = vsel %vm741, %v740, 0
        %748 = vmatprep.subr.bf16.mxu0 0
        %749 = vmatpush1.bf16.xpose.msra.mxu0 0
        %750 = vmatprep.subr.bf16.mxu0 0
        %751 = vmatpush1.bf16.xpose.msra.mxu0 0
        %752 = vmatprep.subr.bf16.mxu0 0
        %753 = vmatpush1.bf16.xpose.msra.mxu0 0
        %754 = vmatprep.subr.bf16.mxu0 0
        %755 = vmatpush1.bf16.xpose.msra.mxu0 0
        %756 = vmatprep.subr.bf16.mxu0 0
        %757 = vmatpush1.bf16.xpose.msra.mxu0 0
        %758 = vmatprep.subr.bf16.mxu0 0
        %759 = vmatpush1.bf16.xpose.msra.mxu0 0
        %760 = vmatprep.subr.bf16.mxu0 0
        %761 = vmatpush1.bf16.xpose.msra.mxu0 0
        %762 = vmatprep.subr.bf16.mxu0 0
        %763 = vmatpush1.bf16.xpose.msra.mxu0 %v746
        %764 = vmatprep.subr.bf16.mxu0 0
        %765 = vmatpush2.bf16.xpose.msra.mxu0 0
        %766 = vmatprep.subr.bf16.mxu0 0
        %767 = vmatpush2.bf16.xpose.msra.mxu0 0
        %768 = vmatprep.subr.bf16.mxu0 0
        %769 = vmatpush2.bf16.xpose.msra.mxu0 0
        %770 = vmatprep.subr.bf16.mxu0 0
        %771 = vmatpush2.bf16.xpose.msra.mxu0 0
        %772 = vmatprep.subr.bf16.mxu0 0
        %773 = vmatpush2.bf16.xpose.msra.mxu0 0
        %774 = vmatprep.subr.bf16.mxu0 0
        %775 = vmatpush2.bf16.xpose.msra.mxu0 0
        %776 = vmatprep.subr.bf16.mxu0 0
        %777 = vmatpush2.bf16.xpose.msra.mxu0 0
        %778 = vmatprep.subr.bf16.mxu0 0
        %779 = vmatpush2.bf16.xpose.msra.mxu0 0
        %780 = vmatprep.mubr.bf16.mxu0 0
        %781 = vmatmul.mubr.bf16.gmra.mxu0 %v743
        %v782 = vpop.f32.mrf.mxu0
        %v783 = vadd.f32 0.0, %v782
        %v784 = vpop.f32.mrf.mxu0
        %v785 = vpop.f32.mrf.mxu0
        %v786 = vpop.f32.mrf.mxu0
        %787 = vdwg.mxu0
        %v788 = vmul.f32 %v783, 0.35355338
        %v789 = vsel %vm741, %v788, -inf
        %790 = vmax.xlane.f32.xlu0 %v789
        %v791 = vpop.xlane.xlu0 %790
        %v792 = vsub.f32 %v788, %v791
        %v793 = vmul.f32 %v792, 1.442695
        %v794 = vpow.pop %v793
        %v795 = vsel %vm741, %v794, 0.0
        %796 = vadd.xlane.f32.xlu0 %v795
        %v797 = vpop.xlane.xlu0 %796
        %v798 = vrcp.pop %v797
        %v799 = vmul.f32 %v794, %v798
        %v800 = vpack.c.bf16 %v799, %v799
        %801 = vrot.lane.b32.xlu0 %v737, 64
        %v802 = vpop.permute.xlu0 %801
        %v804 = vsel %vm741, %v800, 0
        %vm806 = vcmask 1043456
        %v808 = vsel %vm806, %v802, 0
        %810 = vmatprep.subr.bf16.mxu0 0
        %811 = vmatpush1.bf16.msra.mxu0 0
        %812 = vmatprep.subr.bf16.mxu0 0
        %813 = vmatpush1.bf16.msra.mxu0 0
        %814 = vmatprep.subr.bf16.mxu0 0
        %815 = vmatpush1.bf16.msra.mxu0 0
        %816 = vmatprep.subr.bf16.mxu0 0
        %817 = vmatpush1.bf16.msra.mxu0 0
        %818 = vmatprep.subr.bf16.mxu0 0
        %819 = vmatpush1.bf16.msra.mxu0 0
        %820 = vmatprep.subr.bf16.mxu0 0
        %821 = vmatpush1.bf16.msra.mxu0 0
        %822 = vmatprep.subr.bf16.mxu0 0
        %823 = vmatpush1.bf16.msra.mxu0 0
        %824 = vmatprep.subr.bf16.mxu0 0
        %825 = vmatpush1.bf16.msra.mxu0 %v808
        %826 = vmatprep.subr.bf16.mxu0 0
        %827 = vmatpush2.bf16.msra.mxu0 0
        %828 = vmatprep.subr.bf16.mxu0 0
        %829 = vmatpush2.bf16.msra.mxu0 0
        %830 = vmatprep.subr.bf16.mxu0 0
        %831 = vmatpush2.bf16.msra.mxu0 0
        %832 = vmatprep.subr.bf16.mxu0 0
        %833 = vmatpush2.bf16.msra.mxu0 0
        %834 = vmatprep.subr.bf16.mxu0 0
        %835 = vmatpush2.bf16.msra.mxu0 0
        %836 = vmatprep.subr.bf16.mxu0 0
        %837 = vmatpush2.bf16.msra.mxu0 0
        %838 = vmatprep.subr.bf16.mxu0 0
        %839 = vmatpush2.bf16.msra.mxu0 0
        %840 = vmatprep.subr.bf16.mxu0 0
        %841 = vmatpush2.bf16.msra.mxu0 0
        %842 = vmatprep.mubr.bf16.mxu0 0
        %843 = vmatmul.mubr.bf16.gmra.mxu0 %v804
        %v844 = vpop.f32.mrf.mxu0
        %v845 = vadd.f32 0.0, %v844
        %v846 = vpop.f32.mrf.mxu0
        %v847 = vpop.f32.mrf.mxu0
        %v848 = vpop.f32.mrf.mxu0
        %849 = vdwg.mxu0
        %v850 = vpack.c.bf16 %v845, %v845
        %vm851 = vcmask 60416
        %852 = vst.msk [vmem:[#allocation2] sm:$0xf] %vm851, %v850
        %853 = vrot.lane.b32.xlu0 %v737, 120
        %v854 = vpop.permute.xlu0 %853
        %855 = vrot.lane.b32.xlu0 %v737, 88
        %v856 = vpop.permute.xlu0 %855
        %v858 = vsel %vm741, %v854, 0
        %v861 = vsel %vm741, %v856, 0
        %863 = vmatprep.subr.bf16.mxu0 0
        %864 = vmatpush1.bf16.xpose.msra.mxu0 0
        %865 = vmatprep.subr.bf16.mxu0 0
        %866 = vmatpush1.bf16.xpose.msra.mxu0 0
        %867 = vmatprep.subr.bf16.mxu0 0
        %868 = vmatpush1.bf16.xpose.msra.mxu0 0
        %869 = vmatprep.subr.bf16.mxu0 0
        %870 = vmatpush1.bf16.xpose.msra.mxu0 0
        %871 = vmatprep.subr.bf16.mxu0 0
        %872 = vmatpush1.bf16.xpose.msra.mxu0 0
        %873 = vmatprep.subr.bf16.mxu0 0
        %874 = vmatpush1.bf16.xpose.msra.mxu0 0
        %875 = vmatprep.subr.bf16.mxu0 0
        %876 = vmatpush1.bf16.xpose.msra.mxu0 0
        %877 = vmatprep.subr.bf16.mxu0 0
        %878 = vmatpush1.bf16.xpose.msra.mxu0 %v861
        %879 = vmatprep.subr.bf16.mxu0 0
        %880 = vmatpush2.bf16.xpose.msra.mxu0 0
        %881 = vmatprep.subr.bf16.mxu0 0
        %882 = vmatpush2.bf16.xpose.msra.mxu0 0
        %883 = vmatprep.subr.bf16.mxu0 0
        %884 = vmatpush2.bf16.xpose.msra.mxu0 0
        %885 = vmatprep.subr.bf16.mxu0 0
        %886 = vmatpush2.bf16.xpose.msra.mxu0 0
        %887 = vmatprep.subr.bf16.mxu0 0
        %888 = vmatpush2.bf16.xpose.msra.mxu0 0
        %889 = vmatprep.subr.bf16.mxu0 0
        %890 = vmatpush2.bf16.xpose.msra.mxu0 0
        %891 = vmatprep.subr.bf16.mxu0 0
        %892 = vmatpush2.bf16.xpose.msra.mxu0 0
        %893 = vmatprep.subr.bf16.mxu0 0
        %894 = vmatpush2.bf16.xpose.msra.mxu0 0
        %895 = vmatprep.mubr.bf16.mxu0 0
        %896 = vmatmul.mubr.bf16.gmra.mxu0 %v858
        %v897 = vpop.f32.mrf.mxu0
        %v898 = vadd.f32 0.0, %v897
        %v899 = vpop.f32.mrf.mxu0
        %v900 = vpop.f32.mrf.mxu0
        %v901 = vpop.f32.mrf.mxu0
        %902 = vdwg.mxu0
        %v903 = vmul.f32 %v898, 0.35355338
        %v904 = vsel %vm741, %v903, -inf
        %905 = vmax.xlane.f32.xlu0 %v904
        %v906 = vpop.xlane.xlu0 %905
        %v907 = vsub.f32 %v903, %v906
        %v908 = vmul.f32 %v907, 1.442695
        %v909 = vpow.pop %v908
        %v910 = vsel %vm741, %v909, 0.0
        %911 = vadd.xlane.f32.xlu0 %v910
        %v912 = vpop.xlane.xlu0 %911
        %v913 = vrcp.pop %v912
        %v914 = vmul.f32 %v909, %v913
        %v915 = vpack.c.bf16 %v914, %v914
        %916 = vrot.lane.b32.xlu0 %v737, 56
        %v917 = vpop.permute.xlu0 %916
        %v919 = vsel %vm741, %v915, 0
        %v922 = vsel %vm806, %v917, 0
        %924 = vmatprep.subr.bf16.mxu0 0
        %925 = vmatpush1.bf16.msra.mxu0 0
        %926 = vmatprep.subr.bf16.mxu0 0
        %927 = vmatpush1.bf16.msra.mxu0 0
        %928 = vmatprep.subr.bf16.mxu0 0
        %929 = vmatpush1.bf16.msra.mxu0 0
        %930 = vmatprep.subr.bf16.mxu0 0
        %931 = vmatpush1.bf16.msra.mxu0 0
        %932 = vmatprep.subr.bf16.mxu0 0
        %933 = vmatpush1.bf16.msra.mxu0 0
        %934 = vmatprep.subr.bf16.mxu0 0
        %935 = vmatpush1.bf16.msra.mxu0 0
        %936 = vmatprep.subr.bf16.mxu0 0
        %937 = vmatpush1.bf16.msra.mxu0 0
        %938 = vmatprep.subr.bf16.mxu0 0
        %939 = vmatpush1.bf16.msra.mxu0 %v922
        %940 = vmatprep.subr.bf16.mxu0 0
        %941 = vmatpush2.bf16.msra.mxu0 0
        %942 = vmatprep.subr.bf16.mxu0 0
        %943 = vmatpush2.bf16.msra.mxu0 0
        %944 = vmatprep.subr.bf16.mxu0 0
        %945 = vmatpush2.bf16.msra.mxu0 0
        %946 = vmatprep.subr.bf16.mxu0 0
        %947 = vmatpush2.bf16.msra.mxu0 0
        %948 = vmatprep.subr.bf16.mxu0 0
        %949 = vmatpush2.bf16.msra.mxu0 0
        %950 = vmatprep.subr.bf16.mxu0 0
        %951 = vmatpush2.bf16.msra.mxu0 0
        %952 = vmatprep.subr.bf16.mxu0 0
        %953 = vmatpush2.bf16.msra.mxu0 0
        %954 = vmatprep.subr.bf16.mxu0 0
        %955 = vmatpush2.bf16.msra.mxu0 0
        %956 = vmatprep.mubr.bf16.mxu0 0
        %957 = vmatmul.mubr.bf16.gmra.mxu0 %v919
        %v958 = vpop.f32.mrf.mxu0
        %v959 = vadd.f32 0.0, %v958
        %v960 = vpop.f32.mrf.mxu0
        %v961 = vpop.f32.mrf.mxu0
        %v962 = vpop.f32.mrf.mxu0
        %963 = vdwg.mxu0
        %v964 = vpack.c.bf16 %v959, %v959
        %v966 = vunpack.c.l.b16 %v964
        %v967 = vpack.c.b16 %v966, %v966
        %968 = vrot.lane.b32.xlu0 %v967, 8
        %v969 = vpop.permute.xlu0 %968
        %vm971 = vcmask 126016
        %972 = vst.msk [vmem:[#allocation2] sm:$0xf] %vm971, %v969
        %973 = vrot.lane.b32.xlu0 %v737, 112
        %v974 = vpop.permute.xlu0 %973
        %975 = vrot.lane.b32.xlu0 %v737, 80
        %v976 = vpop.permute.xlu0 %975
        %v978 = vsel %vm741, %v974, 0
        %v981 = vsel %vm741, %v976, 0
        %983 = vmatprep.subr.bf16.mxu0 0
        %984 = vmatpush1.bf16.xpose.msra.mxu0 0
        %985 = vmatprep.subr.bf16.mxu0 0
        %986 = vmatpush1.bf16.xpose.msra.mxu0 0
        %987 = vmatprep.subr.bf16.mxu0 0
        %988 = vmatpush1.bf16.xpose.msra.mxu0 0
        %989 = vmatprep.subr.bf16.mxu0 0
        %990 = vmatpush1.bf16.xpose.msra.mxu0 0
        %991 = vmatprep.subr.bf16.mxu0 0
        %992 = vmatpush1.bf16.xpose.msra.mxu0 0
        %993 = vmatprep.subr.bf16.mxu0 0
        %994 = vmatpush1.bf16.xpose.msra.mxu0 0
        %995 = vmatprep.subr.bf16.mxu0 0
        %996 = vmatpush1.bf16.xpose.msra.mxu0 0
        %997 = vmatprep.subr.bf16.mxu0 0
        %998 = vmatpush1.bf16.xpose.msra.mxu0 %v981
        %999 = vmatprep.subr.bf16.mxu0 0
        %1000 = vmatpush2.bf16.xpose.msra.mxu0 0
        %1001 = vmatprep.subr.bf16.mxu0 0
        %1002 = vmatpush2.bf16.xpose.msra.mxu0 0
        %1003 = vmatprep.subr.bf16.mxu0 0
        %1004 = vmatpush2.bf16.xpose.msra.mxu0 0
        %1005 = vmatprep.subr.bf16.mxu0 0
        %1006 = vmatpush2.bf16.xpose.msra.mxu0 0
        %1007 = vmatprep.subr.bf16.mxu0 0
        %1008 = vmatpush2.bf16.xpose.msra.mxu0 0
        %1009 = vmatprep.subr.bf16.mxu0 0
        %1010 = vmatpush2.bf16.xpose.msra.mxu0 0
        %1011 = vmatprep.subr.bf16.mxu0 0
        %1012 = vmatpush2.bf16.xpose.msra.mxu0 0
        %1013 = vmatprep.subr.bf16.mxu0 0
        %1014 = vmatpush2.bf16.xpose.msra.mxu0 0
        %1015 = vmatprep.mubr.bf16.mxu0 0
        %1016 = vmatmul.mubr.bf16.gmra.mxu0 %v978
        %v1017 = vpop.f32.mrf.mxu0
        %v1018 = vadd.f32 0.0, %v1017
        %v1019 = vpop.f32.mrf.mxu0
        %v1020 = vpop.f32.mrf.mxu0
        %v1021 = vpop.f32.mrf.mxu0
        %1022 = vdwg.mxu0
        %v1023 = vmul.f32 %v1018, 0.35355338
        %v1024 = vsel %vm741, %v1023, -inf
        %1025 = vmax.xlane.f32.xlu0 %v1024
        %v1026 = vpop.xlane.xlu0 %1025
        %v1027 = vsub.f32 %v1023, %v1026
        %v1028 = vmul.f32 %v1027, 1.442695
        %v1029 = vpow.pop %v1028
        %v1030 = vsel %vm741, %v1029, 0.0
        %1031 = vadd.xlane.f32.xlu0 %v1030
        %v1032 = vpop.xlane.xlu0 %1031
        %v1033 = vrcp.pop %v1032
        %v1034 = vmul.f32 %v1029, %v1033
        %v1035 = vpack.c.bf16 %v1034, %v1034
        %1036 = vrot.lane.b32.xlu0 %v737, 48
        %v1037 = vpop.permute.xlu0 %1036
        %v1039 = vsel %vm741, %v1035, 0
        %v1042 = vsel %vm806, %v1037, 0
        %1044 = vmatprep.subr.bf16.mxu0 0
        %1045 = vmatpush1.bf16.msra.mxu0 0
        %1046 = vmatprep.subr.bf16.mxu0 0
        %1047 = vmatpush1.bf16.msra.mxu0 0
        %1048 = vmatprep.subr.bf16.mxu0 0
        %1049 = vmatpush1.bf16.msra.mxu0 0
        %1050 = vmatprep.subr.bf16.mxu0 0
        %1051 = vmatpush1.bf16.msra.mxu0 0
        %1052 = vmatprep.subr.bf16.mxu0 0
        %1053 = vmatpush1.bf16.msra.mxu0 0
        %1054 = vmatprep.subr.bf16.mxu0 0
        %1055 = vmatpush1.bf16.msra.mxu0 0
        %1056 = vmatprep.subr.bf16.mxu0 0
        %1057 = vmatpush1.bf16.msra.mxu0 0
        %1058 = vmatprep.subr.bf16.mxu0 0
        %1059 = vmatpush1.bf16.msra.mxu0 %v1042
        %1060 = vmatprep.subr.bf16.mxu0 0
        %1061 = vmatpush2.bf16.msra.mxu0 0
        %1062 = vmatprep.subr.bf16.mxu0 0
        %1063 = vmatpush2.bf16.msra.mxu0 0
        %1064 = vmatprep.subr.bf16.mxu0 0
        %1065 = vmatpush2.bf16.msra.mxu0 0
        %1066 = vmatprep.subr.bf16.mxu0 0
        %1067 = vmatpush2.bf16.msra.mxu0 0
        %1068 = vmatprep.subr.bf16.mxu0 0
        %1069 = vmatpush2.bf16.msra.mxu0 0
        %1070 = vmatprep.subr.bf16.mxu0 0
        %1071 = vmatpush2.bf16.msra.mxu0 0
        %1072 = vmatprep.subr.bf16.mxu0 0
        %1073 = vmatpush2.bf16.msra.mxu0 0
        %1074 = vmatprep.subr.bf16.mxu0 0
        %1075 = vmatpush2.bf16.msra.mxu0 0
        %1076 = vmatprep.mubr.bf16.mxu0 0
        %1077 = vmatmul.mubr.bf16.gmra.mxu0 %v1039
        %v1078 = vpop.f32.mrf.mxu0
        %v1079 = vadd.f32 0.0, %v1078
        %v1080 = vpop.f32.mrf.mxu0
        %v1081 = vpop.f32.mrf.mxu0
        %v1082 = vpop.f32.mrf.mxu0
        %1083 = vdwg.mxu0
        %v1084 = vpack.c.bf16 %v1079, %v1079
        %v1086 = vunpack.c.l.b16 %v1084
        %v1087 = vpack.c.b16 %v1086, %v1086
        %1088 = vrot.lane.b32.xlu0 %v1087, 16
        %v1089 = vpop.permute.xlu0 %1088
        %vm1091 = vcmask 191616
        %1092 = vst.msk [vmem:[#allocation2] sm:$0xf] %vm1091, %v1089
        %1093 = vrot.lane.b32.xlu0 %v737, 104
        %v1094 = vpop.permute.xlu0 %1093
        %1095 = vrot.lane.b32.xlu0 %v737, 72
        %v1096 = vpop.permute.xlu0 %1095
        %v1098 = vsel %vm741, %v1094, 0
        %v1101 = vsel %vm741, %v1096, 0
        %1103 = vmatprep.subr.bf16.mxu0 0
        %1104 = vmatpush1.bf16.xpose.msra.mxu0 0
        %1105 = vmatprep.subr.bf16.mxu0 0
        %1106 = vmatpush1.bf16.xpose.msra.mxu0 0
        %1107 = vmatprep.subr.bf16.mxu0 0
        %1108 = vmatpush1.bf16.xpose.msra.mxu0 0
        %1109 = vmatprep.subr.bf16.mxu0 0
        %1110 = vmatpush1.bf16.xpose.msra.mxu0 0
        %1111 = vmatprep.subr.bf16.mxu0 0
        %1112 = vmatpush1.bf16.xpose.msra.mxu0 0
        %1113 = vmatprep.subr.bf16.mxu0 0
        %1114 = vmatpush1.bf16.xpose.msra.mxu0 0
        %1115 = vmatprep.subr.bf16.mxu0 0
        %1116 = vmatpush1.bf16.xpose.msra.mxu0 0
        %1117 = vmatprep.subr.bf16.mxu0 0
        %1118 = vmatpush1.bf16.xpose.msra.mxu0 %v1101
        %1119 = vmatprep.subr.bf16.mxu0 0
        %1120 = vmatpush2.bf16.xpose.msra.mxu0 0
        %1121 = vmatprep.subr.bf16.mxu0 0
        %1122 = vmatpush2.bf16.xpose.msra.mxu0 0
        %1123 = vmatprep.subr.bf16.mxu0 0
        %1124 = vmatpush2.bf16.xpose.msra.mxu0 0
        %1125 = vmatprep.subr.bf16.mxu0 0
        %1126 = vmatpush2.bf16.xpose.msra.mxu0 0
        %1127 = vmatprep.subr.bf16.mxu0 0
        %1128 = vmatpush2.bf16.xpose.msra.mxu0 0
        %1129 = vmatprep.subr.bf16.mxu0 0
        %1130 = vmatpush2.bf16.xpose.msra.mxu0 0
        %1131 = vmatprep.subr.bf16.mxu0 0
        %1132 = vmatpush2.bf16.xpose.msra.mxu0 0
        %1133 = vmatprep.subr.bf16.mxu0 0
        %1134 = vmatpush2.bf16.xpose.msra.mxu0 0
        %1135 = vmatprep.mubr.bf16.mxu0 0
        %1136 = vmatmul.mubr.bf16.gmra.mxu0 %v1098
        %v1137 = vpop.f32.mrf.mxu0
        %v1138 = vadd.f32 0.0, %v1137
        %v1139 = vpop.f32.mrf.mxu0
        %v1140 = vpop.f32.mrf.mxu0
        %v1141 = vpop.f32.mrf.mxu0
        %1142 = vdwg.mxu0
        %v1143 = vmul.f32 %v1138, 0.35355338
        %v1144 = vsel %vm741, %v1143, -inf
        %1145 = vmax.xlane.f32.xlu0 %v1144
        %v1146 = vpop.xlane.xlu0 %1145
        %v1147 = vsub.f32 %v1143, %v1146
        %v1148 = vmul.f32 %v1147, 1.442695
        %v1149 = vpow.pop %v1148
        %v1150 = vsel %vm741, %v1149, 0.0
        %1151 = vadd.xlane.f32.xlu0 %v1150
        %v1152 = vpop.xlane.xlu0 %1151
        %v1153 = vrcp.pop %v1152
        %v1154 = vmul.f32 %v1149, %v1153
        %v1155 = vpack.c.bf16 %v1154, %v1154
        %1156 = vrot.lane.b32.xlu0 %v737, 40
        %v1157 = vpop.permute.xlu0 %1156
        %v1159 = vsel %vm741, %v1155, 0
        %v1162 = vsel %vm806, %v1157, 0
        %1164 = vmatprep.subr.bf16.mxu0 0
        %1165 = vmatpush1.bf16.msra.mxu0 0
        %1166 = vmatprep.subr.bf16.mxu0 0
        %1167 = vmatpush1.bf16.msra.mxu0 0
        %1168 = vmatprep.subr.bf16.mxu0 0
        %1169 = vmatpush1.bf16.msra.mxu0 0
        %1170 = vmatprep.subr.bf16.mxu0 0
        %1171 = vmatpush1.bf16.msra.mxu0 0
        %1172 = vmatprep.subr.bf16.mxu0 0
        %1173 = vmatpush1.bf16.msra.mxu0 0
        %1174 = vmatprep.subr.bf16.mxu0 0
        %1175 = vmatpush1.bf16.msra.mxu0 0
        %1176 = vmatprep.subr.bf16.mxu0 0
        %1177 = vmatpush1.bf16.msra.mxu0 0
        %1178 = vmatprep.subr.bf16.mxu0 0
        %1179 = vmatpush1.bf16.msra.mxu0 %v1162
        %1180 = vmatprep.subr.bf16.mxu0 0
        %1181 = vmatpush2.bf16.msra.mxu0 0
        %1182 = vmatprep.subr.bf16.mxu0 0
        %1183 = vmatpush2.bf16.msra.mxu0 0
        %1184 = vmatprep.subr.bf16.mxu0 0
        %1185 = vmatpush2.bf16.msra.mxu0 0
        %1186 = vmatprep.subr.bf16.mxu0 0
        %1187 = vmatpush2.bf16.msra.mxu0 0
        %1188 = vmatprep.subr.bf16.mxu0 0
        %1189 = vmatpush2.bf16.msra.mxu0 0
        %1190 = vmatprep.subr.bf16.mxu0 0
        %1191 = vmatpush2.bf16.msra.mxu0 0
        %1192 = vmatprep.subr.bf16.mxu0 0
        %1193 = vmatpush2.bf16.msra.mxu0 0
        %1194 = vmatprep.subr.bf16.mxu0 0
        %1195 = vmatpush2.bf16.msra.mxu0 0
        %1196 = vmatprep.mubr.bf16.mxu0 0
        %1197 = vmatmul.mubr.bf16.gmra.mxu0 %v1159
        %v1198 = vpop.f32.mrf.mxu0
        %v1199 = vadd.f32 0.0, %v1198
        %v1200 = vpop.f32.mrf.mxu0
        %v1201 = vpop.f32.mrf.mxu0
        %v1202 = vpop.f32.mrf.mxu0
        %1203 = vdwg.mxu0
        %v1204 = vpack.c.bf16 %v1199, %v1199
        %v1206 = vunpack.c.l.b16 %v1204
        %v1207 = vpack.c.b16 %v1206, %v1206
        %1208 = vrot.lane.b32.xlu0 %v1207, 24
        %v1209 = vpop.permute.xlu0 %1208
        %vm1211 = vcmask 257216
        %1212 = vst.msk [vmem:[#allocation2] sm:$0xf] %vm1211, %v1209
        %v1213 = vld [vmem:[#allocation2] sm:$0xf]
        %v1214 = vld [vmem:[%s628] sm:$0xf]
        %v1215 = vld [vmem:[%s628 + $0x4] sm:$0xf]
        %v1216 = vld [vmem:[%s628 + $0x8] sm:$0xf]
        %v1217 = vld [vmem:[%s628 + $0xc] sm:$0xf]
        %v1218 = vld [vmem:[%s631] sm:$0x1]
        %v1220 = vlaneseq
        %v1221 = vshrl.u32 %v1220, 7
        %v1222 = vsub.s32 0, %v1221
        %v1223 = vrot.slane %v1218, %v1222
        %v1229 = vunpack.c.l.b16 %v1214
        %v1230 = vunpack.c.l.b16 %v1215
        %v1231 = vunpack.c.l.b16 %v1216
        %v1232 = vunpack.c.l.b16 %v1217
        %v1233 = vpack.c.b16 %v1230, %v1229
        %v1234 = vpack.c.b16 %v1232, %v1231
        %v1238 = vsel %vm693, %v1213, 0
        %1240 = vmatprep.subr.bf16.mxu0 0
        %1241 = vmatpush1.bf16.msra.mxu0 0
        %1242 = vmatprep.subr.bf16.mxu0 0
        %1243 = vmatpush1.bf16.msra.mxu0 0
        %1244 = vmatprep.subr.bf16.mxu0 0
        %1245 = vmatpush1.bf16.msra.mxu0 0
        %1246 = vmatprep.subr.bf16.mxu0 0
        %1247 = vmatpush1.bf16.msra.mxu0 0
        %1248 = vmatprep.subr.bf16.mxu0 0
        %1249 = vmatpush1.bf16.msra.mxu0 0
        %1250 = vmatprep.subr.bf16.mxu0 0
        %1251 = vmatpush1.bf16.msra.mxu0 0
        %1252 = vmatprep.subr.bf16.mxu0 0
        %1253 = vmatpush1.bf16.msra.mxu0 %v1234
        %1254 = vmatprep.subr.bf16.mxu0 0
        %1255 = vmatpush1.bf16.msra.mxu0 %v1233
        %1256 = vmatprep.subr.bf16.mxu0 0
        %1257 = vmatpush2.bf16.msra.mxu0 0
        %1258 = vmatprep.subr.bf16.mxu0 0
        %1259 = vmatpush2.bf16.msra.mxu0 0
        %1260 = vmatprep.subr.bf16.mxu0 0
        %1261 = vmatpush2.bf16.msra.mxu0 0
        %1262 = vmatprep.subr.bf16.mxu0 0
        %1263 = vmatpush2.bf16.msra.mxu0 0
        %1264 = vmatprep.subr.bf16.mxu0 0
        %1265 = vmatpush2.bf16.msra.mxu0 0
        %1266 = vmatprep.subr.bf16.mxu0 0
        %1267 = vmatpush2.bf16.msra.mxu0 0
        %1268 = vmatprep.subr.bf16.mxu0 0
        %1269 = vmatpush2.bf16.msra.mxu0 0
        %1270 = vmatprep.subr.bf16.mxu0 0
        %1271 = vmatpush2.bf16.msra.mxu0 0
        %1272 = vmatprep.mubr.bf16.mxu0 0
        %1273 = vmatmul.mubr.bf16.gmra.mxu0 %v1238
        %v1274 = vpop.f32.mrf.mxu0
        %v1275 = vadd.f32 %v1223, %v1274
        %v1276 = vpop.f32.mrf.mxu0
        %v1277 = vpop.f32.mrf.mxu0
        %v1278 = vpop.f32.mrf.mxu0
        %1279 = vdwg.mxu0
        %v1280 = vadd.f32 %v668, %v1275
        %v1281 = vsel %vm693, %v1280, 0.0
        %1282 = vadd.xlane.f32.xlu0 %v1281
        %v1283 = vpop.xlane.xlu0 %1282
        %v1284 = vrcp.pop 32.0
        %v1285 = vmul.f32 %v1283, %v1284
        %v1286 = vsub.f32 %v1280, %v1285
        %v1287 = vmul.f32 %v1286, %v1286
        %v1288 = vsel %vm693, %v1287, 0.0
        %1289 = vadd.xlane.f32.xlu0 %v1288
        %v1290 = vpop.xlane.xlu0 %1289
        %v1291 = vmul.f32 %v1290, %v1284
        %v1292 = vrsqrt.pop %v1291
        %v1293 = vmul.f32 %v1291, %v1292
        %vm1294 = vcmp.eq.f32.partialorder %v1291, inf
        %v1295 = vsel %vm1294, %v1291, %v1293
        %vm1296 = vcmp.eq.f32.partialorder %v1291, 0.0
        %v1297 = vand.u32 %v1291, 2147483648
        %v1298 = vsel %vm1296, %v1297, %v1295
        %v1299 = vld [vmem:[%s634] sm:$0x1]
        %v1301 = vlaneseq
        %v1302 = vshrl.u32 %v1301, 7
        %v1303 = vsub.s32 0, %v1302
        %v1304 = vrot.slane %v1299, %v1303
        %v1306 = vmul.f32 %v1304, %v1286
        %v1307 = vadd.f32 %v1298, 1e-10
        %v1308 = vrcp.pop %v1307
        %v1309 = vmul.f32 %v1306, %v1308
        %v1310 = vld [vmem:[%s637] sm:$0x1]
        %v1312 = vlaneseq
        %v1313 = vshrl.u32 %v1312, 7
        %v1314 = vsub.s32 0, %v1313
        %v1315 = vrot.slane %v1310, %v1314
        %v1317 = vadd.f32 %v1309, %v1315
        %v1318 = vpack.c.bf16 %v1317, %v1317
        %v1319 = vld [vmem:[%s642] sm:$0xf]
        %v1320 = vld [vmem:[%s642 + $0x4] sm:$0xf]
        %v1321 = vld [vmem:[%s642 + $0x8] sm:$0xf]
        %v1322 = vld [vmem:[%s642 + $0xc] sm:$0xf]
        %v1323 = vld [vmem:[%s645] sm:$0x1]
        %v1325 = vlaneseq
        %v1326 = vshrl.u32 %v1325, 7
        %v1327 = vsub.s32 0, %v1326
        %v1328 = vrot.slane %v1323, %v1327
        %v1334 = vunpack.c.l.b16 %v1319
        %v1335 = vunpack.c.l.b16 %v1320
        %v1336 = vunpack.c.l.b16 %v1321
        %v1337 = vunpack.c.l.b16 %v1322
        %v1338 = vpack.c.b16 %v1335, %v1334
        %v1339 = vpack.c.b16 %v1337, %v1336
        %v1343 = vsel %vm693, %v1318, 0
        %1345 = vmatprep.subr.bf16.mxu0 0
        %1346 = vmatpush1.bf16.msra.mxu0 0
        %1347 = vmatprep.subr.bf16.mxu0 0
        %1348 = vmatpush1.bf16.msra.mxu0 0
        %1349 = vmatprep.subr.bf16.mxu0 0
        %1350 = vmatpush1.bf16.msra.mxu0 0
        %1351 = vmatprep.subr.bf16.mxu0 0
        %1352 = vmatpush1.bf16.msra.mxu0 0
        %1353 = vmatprep.subr.bf16.mxu0 0
        %1354 = vmatpush1.bf16.msra.mxu0 0
        %1355 = vmatprep.subr.bf16.mxu0 0
        %1356 = vmatpush1.bf16.msra.mxu0 0
        %1357 = vmatprep.subr.bf16.mxu0 0
        %1358 = vmatpush1.bf16.msra.mxu0 %v1339
        %1359 = vmatprep.subr.bf16.mxu0 0
        %1360 = vmatpush1.bf16.msra.mxu0 %v1338
        %1361 = vmatprep.subr.bf16.mxu0 0
        %1362 = vmatpush2.bf16.msra.mxu0 0
        %1363 = vmatprep.subr.bf16.mxu0 0
        %1364 = vmatpush2.bf16.msra.mxu0 0
        %1365 = vmatprep.subr.bf16.mxu0 0
        %1366 = vmatpush2.bf16.msra.mxu0 0
        %1367 = vmatprep.subr.bf16.mxu0 0
        %1368 = vmatpush2.bf16.msra.mxu0 0
        %1369 = vmatprep.subr.bf16.mxu0 0
        %1370 = vmatpush2.bf16.msra.mxu0 0
        %1371 = vmatprep.subr.bf16.mxu0 0
        %1372 = vmatpush2.bf16.msra.mxu0 0
        %1373 = vmatprep.subr.bf16.mxu0 0
        %1374 = vmatpush2.bf16.msra.mxu0 0
        %1375 = vmatprep.subr.bf16.mxu0 0
        %1376 = vmatpush2.bf16.msra.mxu0 0
        %1377 = vmatprep.mubr.bf16.mxu0 0
        %1378 = vmatmul.mubr.bf16.gmra.mxu0 %v1343
        %v1379 = vpop.f32.mrf.mxu0
        %v1380 = vadd.f32 %v1328, %v1379
        %v1381 = vpop.f32.mrf.mxu0
        %v1382 = vpop.f32.mrf.mxu0
        %v1383 = vpop.f32.mrf.mxu0
        %1384 = vdwg.mxu0
        %v1385 = vmax.f32 %v1380, 0.0
        %v1386 = vpack.c.bf16 %v1385, %v1385
        %v1387 = vld [vmem:[%s650] sm:$0xf]
        %v1388 = vld [vmem:[%s650 + $0x4] sm:$0xf]
        %v1389 = vld [vmem:[%s650 + $0x8] sm:$0xf]
        %v1390 = vld [vmem:[%s650 + $0xc] sm:$0xf]
        %v1391 = vld [vmem:[%s650 + $0x10] sm:$0xf]
        %v1392 = vld [vmem:[%s650 + $0x14] sm:$0xf]
        %v1393 = vld [vmem:[%s650 + $0x18] sm:$0xf]
        %v1394 = vld [vmem:[%s650 + $0x1c] sm:$0xf]
        %v1395 = vld [vmem:[%s653] sm:$0x1]
        %v1397 = vlaneseq
        %v1398 = vshrl.u32 %v1397, 7
        %v1399 = vsub.s32 0, %v1398
        %v1400 = vrot.slane %v1395, %v1399
        %v1410 = vunpack.c.l.b16 %v1387
        %v1411 = vunpack.c.l.b16 %v1388
        %v1412 = vunpack.c.l.b16 %v1389
        %v1413 = vunpack.c.l.b16 %v1390
        %v1414 = vunpack.c.l.b16 %v1391
        %v1415 = vunpack.c.l.b16 %v1392
        %v1416 = vunpack.c.l.b16 %v1393
        %v1417 = vunpack.c.l.b16 %v1394
        %v1418 = vpack.c.b16 %v1411, %v1410
        %v1419 = vpack.c.b16 %v1413, %v1412
        %v1420 = vpack.c.b16 %v1415, %v1414
        %v1421 = vpack.c.b16 %v1417, %v1416
        %vm1426 = vcmask 523264
        %v1428 = vsel %vm1426, %v1386, 0
        %1430 = vmatprep.subr.bf16.mxu0 0
        %1431 = vmatpush1.bf16.msra.mxu0 0
        %1432 = vmatprep.subr.bf16.mxu0 0
        %1433 = vmatpush1.bf16.msra.mxu0 0
        %1434 = vmatprep.subr.bf16.mxu0 0
        %1435 = vmatpush1.bf16.msra.mxu0 0
        %1436 = vmatprep.subr.bf16.mxu0 0
        %1437 = vmatpush1.bf16.msra.mxu0 0
        %1438 = vmatprep.subr.bf16.mxu0 0
        %1439 = vmatpush1.bf16.msra.mxu0 %v1421
        %1440 = vmatprep.subr.bf16.mxu0 0
        %1441 = vmatpush1.bf16.msra.mxu0 %v1420
        %1442 = vmatprep.subr.bf16.mxu0 0
        %1443 = vmatpush1.bf16.msra.mxu0 %v1419
        %1444 = vmatprep.subr.bf16.mxu0 0
        %1445 = vmatpush1.bf16.msra.mxu0 %v1418
        %1446 = vmatprep.subr.bf16.mxu0 0
        %1447 = vmatpush2.bf16.msra.mxu0 0
        %1448 = vmatprep.subr.bf16.mxu0 0
        %1449 = vmatpush2.bf16.msra.mxu0 0
        %1450 = vmatprep.subr.bf16.mxu0 0
        %1451 = vmatpush2.bf16.msra.mxu0 0
        %1452 = vmatprep.subr.bf16.mxu0 0
        %1453 = vmatpush2.bf16.msra.mxu0 0
        %1454 = vmatprep.subr.bf16.mxu0 0
        %1455 = vmatpush2.bf16.msra.mxu0 0
        %1456 = vmatprep.subr.bf16.mxu0 0
        %1457 = vmatpush2.bf16.msra.mxu0 0
        %1458 = vmatprep.subr.bf16.mxu0 0
        %1459 = vmatpush2.bf16.msra.mxu0 0
        %1460 = vmatprep.subr.bf16.mxu0 0
        %1461 = vmatpush2.bf16.msra.mxu0 0
        %1462 = vmatprep.mubr.bf16.mxu0 0
        %1463 = vmatmul.mubr.bf16.gmra.mxu0 %v1428
        %v1464 = vpop.f32.mrf.mxu0
        %v1465 = vadd.f32 %v1400, %v1464
        %v1466 = vpop.f32.mrf.mxu0
        %v1467 = vpop.f32.mrf.mxu0
        %v1468 = vpop.f32.mrf.mxu0
        %1469 = vdwg.mxu0
        %v1470 = vadd.f32 %v1317, %v1465
        %v1471 = vsel %vm693, %v1470, 0.0
        %1472 = vadd.xlane.f32.xlu0 %v1471
        %v1473 = vpop.xlane.xlu0 %1472
        %v1474 = vmul.f32 %v1473, %v1284
        %v1475 = vsub.f32 %v1470, %v1474
        %v1476 = vmul.f32 %v1475, %v1475
        %v1477 = vsel %vm693, %v1476, 0.0
        %1478 = vadd.xlane.f32.xlu0 %v1477
        %v1479 = vpop.xlane.xlu0 %1478
        %v1480 = vmul.f32 %v1479, %v1284
        %v1481 = vrsqrt.pop %v1480
        %v1482 = vmul.f32 %v1480, %v1481
        %vm1483 = vcmp.eq.f32.partialorder %v1480, inf
        %v1484 = vsel %vm1483, %v1480, %v1482
        %vm1485 = vcmp.eq.f32.partialorder %v1480, 0.0
        %v1486 = vand.u32 %v1480, 2147483648
        %v1487 = vsel %vm1485, %v1486, %v1484
        %v1488 = vld [vmem:[%s656] sm:$0x1]
        %v1490 = vlaneseq
        %v1491 = vshrl.u32 %v1490, 7
        %v1492 = vsub.s32 0, %v1491
        %v1493 = vrot.slane %v1488, %v1492
        %v1495 = vmul.f32 %v1493, %v1475
        %v1496 = vadd.f32 %v1487, 1e-10
        %v1497 = vrcp.pop %v1496
        %v1498 = vmul.f32 %v1495, %v1497
        %v1499 = vld [vmem:[%s659] sm:$0x1]
        %v1501 = vlaneseq
        %v1502 = vshrl.u32 %v1501, 7
        %v1503 = vsub.s32 0, %v1502
        %v1504 = vrot.slane %v1499, %v1503
        %v1506 = vadd.f32 %v1498, %v1504
        %1507 = vst.msk [vmem:[%s615] sm:$0xff] %vm693, %v1506
        %s1508 = sand.u32 %s388, 1
        %s1509 = scalar_lea.sflag [#allocation5], %s1508
        %s1510 = sand.u32 %s388, 1
        %s1511 = smul.addr %s1510, 8
        %s1512 = scalar_lea.vmem [#allocation6], %s1511
        // Predicated region
        $region81: #{tpu_custom_call.1} parent=71 // pred_check
          %p1513 = pneg %p398
        $region82: #{tpu_custom_call.1} parent=71 // pred_check_branch
          %1515 = sbr.rel (%p1513) target = $region84
        $region83: #{tpu_custom_call.1} parent=71 // pred_region
          %s1517 = ssub.s32 128, 128
          %1518 = vsyncadd %s1509, %s1517
          %s1519 = smul.addr %s34, 128
          %s1520 = scalar_lea.hbm %s13, %s1519
          %s1522 = sshll.u32 %s1512, 4
          %s1523 = int_to_ptr.vmem [resolvable:$true] %s1522
          %1525 = dma.vmem_to_hbm [thread:$0]  %s1523, 128, %s1520, %s1509
        $region84: #{tpu_custom_call.1} parent=71 // pred_fallthru
          _
      $region72: #{tpu_custom_call.1} parent=5 // pred_fallthru
        _
      %p1526 = scmp.le.s32.totalorder 2, %s25
      // Predicated region
      $region85: #{tpu_custom_call.1} parent=5 // pred_check
        %p1527 = pneg %p1526
      $region86: #{tpu_custom_call.1} parent=5 // pred_check_branch
        %1529 = sbr.rel (%p1527) target = $region88
      $region87: #{tpu_custom_call.1} parent=5 // pred_region
        %s1530 = ssub.s32 %s25, 2
        // Predicated region
        $region89: #{tpu_custom_call.1} parent=87 // pred_check
          %p1531 = pneg %p404
        $region90: #{tpu_custom_call.1} parent=87 // pred_check_branch
          %1533 = sbr.rel (%p1531) target = $region92
        $region91: #{tpu_custom_call.1} parent=87 // pred_region
          %s1534 = sand.u32 %s389, 1
          %s1535 = scalar_lea.sflag [#allocation5], %s1534
          %s1536 = sand.u32 %s389, 1
          %s1537 = smul.addr %s1536, 8
          %s1538 = scalar_lea.vmem [#allocation6], %s1537
          %1539 = dma.done %s1535, 128
        $region92: #{tpu_custom_call.1} parent=87 // pred_fallthru
          _
      $region88: #{tpu_custom_call.1} parent=5 // pred_fallthru
        _
    $region6: #{tpu_custom_call.1} parent=1 // loop_footer
      %s29 = sadd.s32 1, %s25
    $region7: #{tpu_custom_call.1} parent=1 // loop_footer_branch
      %24 = sbr.rel target = $region3
    $region8: #{tpu_custom_call.1} parent=1 // loop_exit
      _
    %1540 = vsyncpa [#allocation4], 1
    %s1541 = scalar_lea.sflag [#allocation4], 1
    %1542 = vsyncpa %s1541, 1
    %1543 = vsyncpa [#allocation5], 1
    %s1544 = scalar_lea.sflag [#allocation5], 1
    %1545 = vsyncpa %s1544, 1

</llo_original>
